<compile_context>
chip_gen: v6e
topology: v6e:2x2x1
jax: 0.10.0
libtpu: 0.0.40
codegen_flags: <defaults>
</compile_context>

<pallas_src>
import functools

import jax
import jax.numpy as jnp
from jax import lax
from jax.experimental import pallas as pl
from jax.experimental.pallas import tpu as pltpu


# ----------------------------------------------------------------------------
# Small BERT config + deterministic parameters
# ----------------------------------------------------------------------------
VOCAB = 100
HIDDEN = 32
N_LAYERS = 2
N_HEADS = 2
HEAD_DIM = HIDDEN // N_HEADS
INTERMEDIATE = 64
MAX_POS = 16
TYPE_VOCAB = 2
LN_EPS = 1e-12


# ----------------------------------------------------------------------------
# In-kernel math helpers (f32, VPU/EUP only)
# ----------------------------------------------------------------------------
def _gelu_erf(x):
    """Exact (erf) GELU, matching HF BERT's 'gelu'.

    erf is evaluated with the Abramowitz & Stegun 7.1.26 rational approximation
    (|err| < 1.5e-7) so only mul/add/exp/select are emitted.
    """
    a1, a2, a3, a4, a5 = 0.254829592, -0.284496736, 1.421413741, -1.453152027, 1.061405429
    p = 0.3275911
    z = x * 0.7071067811865475          # x / sqrt(2)
    az = jnp.abs(z)
    t = 1.0 / (1.0 + p * az)
    poly = ((((a5 * t + a4) * t + a3) * t + a2) * t + a1) * t
    erf_abs = 1.0 - poly * jnp.exp(-az * az)
    erf = jnp.where(z >= 0, erf_abs, -erf_abs)
    return 0.5 * x * (1.0 + erf)


def _layer_norm(x, g, b, eps):
    mu = jnp.mean(x, axis=-1, keepdims=True)
    xc = x - mu
    var = jnp.mean(xc * xc, axis=-1, keepdims=True)
    return xc * lax.rsqrt(var + eps) * g + b


def _mxu(a, b):
    """bf16-operand MXU matmul with f32 accumulation."""
    return jnp.dot(a.astype(jnp.bfloat16), b.astype(jnp.bfloat16),
                   preferred_element_type=jnp.float32)


# ----------------------------------------------------------------------------
# Fused encoder kernel: ONE grid step runs the whole encoder.
# All weights are fully resident; the layer loop is a static unroll.
# ----------------------------------------------------------------------------
def _encoder_kernel(emb_ref, emb_ln_ref, mask_ref,
                    wqkv_ref, wo_ref, w1_ref, w2_ref, small_ref,
                    o_ref,
                    *, n_layers, batch, seq, hidden, inter, n_heads, head_dim, eps):
    H, I = hidden, inter

    # Embedding LayerNorm seeds the residual stream (kept in values/vregs —
    # no scratch buffer, no HBM round trips between layers).
    eln = emb_ln_ref[...]                                       # [2, H] f32
    x = _layer_norm(emb_ref[...], eln[0:1, :], eln[1:2, :], eps)  # [B*S, H] f32

    # Additive attention mask, broadcast once (hoisted out of all loops).
    mask_b = jnp.broadcast_to(mask_ref[...], (batch, seq, seq))   # [B, S, S]

    for l in range(n_layers):                                    # static unroll
        small = small_ref[l]                                     # [8, 3H] f32
        bqkv = small[0:1, :]                                     # [1, 3H] (scale folded in q part)
        bo = small[1:2, :H]
        ln1_g = small[2:3, :H]
        ln1_b = small[3:4, :H]
        b1 = small[4:5, :I]
        b2 = small[5:6, :H]
        ln2_g = small[6:7, :H]
        ln2_b = small[7:8, :H]

        # ---- attention: fused QKV projection (scale pre-folded into Wq/bq) ----
        qkv = _mxu(x, wqkv_ref[l]) + bqkv                        # [B*S, 3H] f32
        wo_l = wo_ref[l]                                         # [H, H] bf16

        attn = jnp.zeros((batch * seq, H), jnp.float32)
        for h in range(n_heads):                                 # unrolled (n_heads=2)
            lo = h * head_dim
            qh = qkv[:, lo:lo + head_dim].reshape(batch, seq, head_dim)
            kh = qkv[:, H + lo:H + lo + head_dim].reshape(batch, seq, head_dim)
            vh = qkv[:, 2 * H + lo:2 * H + lo + head_dim].reshape(batch, seq, head_dim)

            s = jnp.einsum("bqd,bkd->bqk",
                           qh.astype(jnp.bfloat16), kh.astype(jnp.bfloat16),
                           preferred_element_type=jnp.float32) + mask_b
            s = s - jnp.max(s, axis=-1, keepdims=True)
            p = jnp.exp(s)
            p = p / jnp.sum(p, axis=-1, keepdims=True)           # exact softmax normalization
            ctx = jnp.einsum("bqk,bkd->bqd",
                             p.astype(jnp.bfloat16), vh.astype(jnp.bfloat16),
                             preferred_element_type=jnp.float32)
            ctx = ctx.reshape(batch * seq, head_dim)
            # Accumulate through per-head row-slices of Wo (sublane-aligned):
            # avoids the lane-axis concat of head outputs entirely.
            attn = attn + _mxu(ctx, wo_l[lo:lo + head_dim, :])

        # ---- output projection bias + residual + LayerNorm (fused) ----
        x = _layer_norm(attn + bo + x, ln1_g, ln1_b, eps)

        # ---- FFN (exact-erf GELU) + residual + LayerNorm (fused) ----
        h1 = _gelu_erf(_mxu(x, w1_ref[l]) + b1)
        ffn = _mxu(h1, w2_ref[l]) + b2
        x = _layer_norm(ffn + x, ln2_g, ln2_b, eps)

    # Single HBM writeback of the residual stream.
    o_ref[...] = x.astype(o_ref.dtype)


def bert_encoder(emb_sum, emb_ln, mask_add, stacked):
    """emb_sum: [B*S, H] f32; emb_ln: [2, H] (gamma;beta); mask_add: [B, 1, S];
    stacked: bf16 weights [L,...] + packed f32 small params [L, 8, 3H]."""
    M, H = emb_sum.shape
    B = mask_add.shape[0]
    S = M // B
    L = stacked["wqkv"].shape[0]
    I = stacked["w1"].shape[-1]
    nH, dH = N_HEADS, H // N_HEADS

    kern = functools.partial(
        _encoder_kernel, n_layers=L, batch=B, seq=S, hidden=H, inter=I,
        n_heads=nH, head_dim=dH, eps=LN_EPS)

    inputs = (emb_sum, emb_ln, mask_add,
              stacked["wqkv"], stacked["wo"], stacked["w1"], stacked["w2"],
              stacked["small"])

    # Advisory cost estimate so XLA schedules the embedding gathers around us.
    flops_dense = 2 * M * H * (3 * H) + 2 * M * H * H + 2 * M * H * I + 2 * M * I * H
    flops_attn = 2 * (2 * B * nH * S * S * dH)
    flops = int(L * (flops_dense + flops_attn))
    transcendentals = int(L * (B * nH * S * S + M * I))          # softmax exp + GELU exp
    bytes_accessed = int(sum(int(a.size) * a.dtype.itemsize for a in inputs) + M * H * 4)

    return pl.pallas_call(
        kern,
        out_shape=jax.ShapeDtypeStruct((M, H), jnp.float32),
        grid=(1,),                                               # whole encoder = one step
        in_specs=[
            pl.BlockSpec((M, H), lambda i: (0, 0)),              # embeddings
            pl.BlockSpec((2, H), lambda i: (0, 0)),              # emb LN (gamma; beta)
            pl.BlockSpec((B, 1, S), lambda i: (0, 0, 0)),        # additive attention mask
            pl.BlockSpec((L, H, 3 * H), lambda i: (0, 0, 0)),    # wqkv (bf16, scale folded)
            pl.BlockSpec((L, H, H), lambda i: (0, 0, 0)),        # wo   (bf16)
            pl.BlockSpec((L, H, I), lambda i: (0, 0, 0)),        # w1   (bf16)
            pl.BlockSpec((L, I, H), lambda i: (0, 0, 0)),        # w2   (bf16)
            pl.BlockSpec((L, 8, 3 * H), lambda i: (0, 0, 0)),    # packed small params (f32)
        ],
        out_specs=pl.BlockSpec((M, H), lambda i: (0, 0)),
        cost_estimate=pl.CostEstimate(flops=flops,
                                      transcendentals=transcendentals,
                                      bytes_accessed=bytes_accessed),
        compiler_params=pltpu.CompilerParams(
            dimension_semantics=("arbitrary",)),
    )(*inputs)


# ----------------------------------------------------------------------------
# Deterministic parameters
# ----------------------------------------------------------------------------
def init_params(key):
    def nrm(key, shape):
        return (0.02 * jax.random.normal(key, shape)).astype(jnp.float32)

    keys = iter(jax.random.split(key, 8 + N_LAYERS * 8))
    p = {
        "word_emb": nrm(next(keys), (VOCAB, HIDDEN)),
        "pos_emb": nrm(next(keys), (MAX_POS, HIDDEN)),
        "type_emb": nrm(next(keys), (TYPE_VOCAB, HIDDEN)),
        "emb_ln_g": jnp.ones((HIDDEN,), jnp.float32),
        "emb_ln_b": jnp.zeros((HIDDEN,), jnp.float32),
        "layers": [],
    }
    for _ in range(N_LAYERS):
        lp = {
            "wq": nrm(next(keys), (HIDDEN, HIDDEN)), "bq": jnp.zeros((HIDDEN,), jnp.float32),
            "wk": nrm(next(keys), (HIDDEN, HIDDEN)), "bk": jnp.zeros((HIDDEN,), jnp.float32),
            "wv": nrm(next(keys), (HIDDEN, HIDDEN)), "bv": jnp.zeros((HIDDEN,), jnp.float32),
            "wo": nrm(next(keys), (HIDDEN, HIDDEN)), "bo": jnp.zeros((HIDDEN,), jnp.float32),
            "attn_ln_g": jnp.ones((HIDDEN,), jnp.float32),
            "attn_ln_b": jnp.zeros((HIDDEN,), jnp.float32),
            "w1": nrm(next(keys), (HIDDEN, INTERMEDIATE)),
            "b1": jnp.zeros((INTERMEDIATE,), jnp.float32),
            "w2": nrm(next(keys), (INTERMEDIATE, HIDDEN)),
            "b2": jnp.zeros((HIDDEN,), jnp.float32),
            "ffn_ln_g": jnp.ones((HIDDEN,), jnp.float32),
            "ffn_ln_b": jnp.zeros((HIDDEN,), jnp.float32),
        }
        p["layers"].append(lp)
    return p


def _stack_layers(layers):
    """Pack per-layer params into [L, ...] arrays.

    * wqkv / wo / w1 / w2 are stored bf16 (MXU operands); the attention scale
      1/sqrt(head_dim) is folded into the Q columns of wqkv (and bq).
    * All 1-row params are packed into ONE [L, 8, 3H] f32 block:
        row 0: bqkv (3H)     row 1: bo (H)      row 2: ln1_g   row 3: ln1_b
        row 4: b1 (I)        row 5: b2 (H)      row 6: ln2_g   row 7: ln2_b
      (rows right-padded with zeros to width 3H).
    """
    scale = 1.0 / (HEAD_DIM ** 0.5)
    W = 3 * HIDDEN

    def stk(f):
        return jnp.stack([f(lp) for lp in layers])

    def pad_row(v):
        v = v.reshape(1, -1)
        return jnp.pad(v, ((0, 0), (0, W - v.shape[1])))

    return {
        "wqkv": stk(lambda lp: jnp.concatenate(
            [lp["wq"] * scale, lp["wk"], lp["wv"]], axis=1)).astype(jnp.bfloat16),
        "wo": stk(lambda lp: lp["wo"]).astype(jnp.bfloat16),
        "w1": stk(lambda lp: lp["w1"]).astype(jnp.bfloat16),
        "w2": stk(lambda lp: lp["w2"]).astype(jnp.bfloat16),
        "small": stk(lambda lp: jnp.concatenate([
            pad_row(jnp.concatenate([lp["bq"] * scale, lp["bk"], lp["bv"]])),
            pad_row(lp["bo"]),
            pad_row(lp["attn_ln_g"]), pad_row(lp["attn_ln_b"]),
            pad_row(lp["b1"]),
            pad_row(lp["b2"]),
            pad_row(lp["ffn_ln_g"]), pad_row(lp["ffn_ln_b"]),
        ], axis=0)),
    }


# ----------------------------------------------------------------------------
# TextNet forward (== BERT last_hidden_state)
# ----------------------------------------------------------------------------
def textnet_forward(params, tokens, segments, input_masks):
    B, S = tokens.shape
    # Embedding gathers stay as glue (data-dependent table lookups); everything
    # else (emb LN + all transformer layers) runs in one fused Pallas kernel.
    word = jnp.take(params["word_emb"], tokens, axis=0)          # [B, S, H]
    typ = jnp.take(params["type_emb"], segments, axis=0)         # [B, S, H]
    pos = params["pos_emb"][:S][None, :, :]                      # [1, S, H]
    emb_sum = (word + typ + pos).reshape(B * S, HIDDEN)          # [B*S, H]

    # BERT extended attention mask: (1 - mask) * -10000, broadcast over queries.
    mask_add = ((1.0 - input_masks.astype(jnp.float32)) * -10000.0)[:, None, :]  # [B,1,S]

    emb_ln = jnp.stack([params["emb_ln_g"], params["emb_ln_b"]])  # [2, H]
    stacked = _stack_layers(params["layers"])
    x = bert_encoder(emb_sum, emb_ln, mask_add, stacked)
    return x.reshape(B, S, HIDDEN)  # == output[0] (last_hidden_state)


if __name__ == "__main__":
    key = jax.random.PRNGKey(0)
    pkey, tkey = jax.random.split(key)
    params = init_params(pkey)

    B, S = 2, 8
    tokens = jax.random.randint(tkey, (B, S), 0, VOCAB, dtype=jnp.int32)
    segments = jnp.concatenate(
        [jnp.zeros((B, S // 2), jnp.int32), jnp.ones((B, S // 2), jnp.int32)], axis=1
    )
    input_masks = jnp.array(
        [[1] * S, [1] * (S - 2) + [0, 0]], dtype=jnp.int32
    )  # second sequence has 2 padded positions

    out = jax.jit(textnet_forward)(params, tokens, segments, input_masks)
    out = jax.block_until_ready(out)
    assert out.shape == (B, S, HIDDEN) and out.dtype == jnp.float32
    assert bool(jnp.all(jnp.isfinite(out)))
    print("KERNEL_OK")
</pallas_src>

<mosaic_0001>
module attributes {stable_mosaic.version = 11 : i64} {
  func.func @_encoder_kernel(%arg0: i32, %arg1: memref<16x32xf32, #tpu.memory_space<vmem>>, %arg2: memref<2x32xf32, #tpu.memory_space<vmem>>, %arg3: memref<2x1x8xf32, #tpu.memory_space<vmem>>, %arg4: memref<2x32x96xbf16, #tpu.memory_space<vmem>>, %arg5: memref<2x32x32xbf16, #tpu.memory_space<vmem>>, %arg6: memref<2x32x64xbf16, #tpu.memory_space<vmem>>, %arg7: memref<2x64x32xbf16, #tpu.memory_space<vmem>>, %arg8: memref<2x8x96xf32, #tpu.memory_space<vmem>>, %arg9: memref<16x32xf32, #tpu.memory_space<vmem>>) attributes {dimension_semantics = [#tpu.dimension_semantics<arbitrary>], iteration_bounds = array<i64: 1>, scalar_prefetch = 0 : i64, scratch_operands = 0 : i64, tpu.core_type = #tpu.core_type<tc>, window_params = [{pipeline_mode = #tpu.pipeline_mode<synchronous>, transform_indices = @transform_0, window_bounds = array<i64: 16, 32>}, {pipeline_mode = #tpu.pipeline_mode<synchronous>, transform_indices = @transform_1, window_bounds = array<i64: 2, 32>}, {pipeline_mode = #tpu.pipeline_mode<synchronous>, transform_indices = @transform_2, window_bounds = array<i64: 2, 1, 8>}, {pipeline_mode = #tpu.pipeline_mode<synchronous>, transform_indices = @transform_3, window_bounds = array<i64: 2, 32, 96>}, {pipeline_mode = #tpu.pipeline_mode<synchronous>, transform_indices = @transform_4, window_bounds = array<i64: 2, 32, 32>}, {pipeline_mode = #tpu.pipeline_mode<synchronous>, transform_indices = @transform_5, window_bounds = array<i64: 2, 32, 64>}, {pipeline_mode = #tpu.pipeline_mode<synchronous>, transform_indices = @transform_6, window_bounds = array<i64: 2, 64, 32>}, {pipeline_mode = #tpu.pipeline_mode<synchronous>, transform_indices = @transform_7, window_bounds = array<i64: 2, 8, 96>}, {pipeline_mode = #tpu.pipeline_mode<synchronous>, transform_indices = @transform_8, window_bounds = array<i64: 16, 32>}]} {
    %c0 = arith.constant 0 : index
    %c0_0 = arith.constant 0 : index
    %0 = vector.load %arg2[%c0, %c0_0] : memref<2x32xf32, #tpu.memory_space<vmem>>, vector<2x32xf32>
    %c0_1 = arith.constant 0 : index
    %c0_2 = arith.constant 0 : index
    %1 = vector.load %arg1[%c0_1, %c0_2] : memref<16x32xf32, #tpu.memory_space<vmem>>, vector<16x32xf32>
    %2 = vector.extract_strided_slice %0 {offsets = [0, 0], sizes = [1, 32], strides = [1, 1]} : vector<2x32xf32> to vector<1x32xf32>
    %3 = vector.extract_strided_slice %0 {offsets = [1, 0], sizes = [1, 32], strides = [1, 1]} : vector<2x32xf32> to vector<1x32xf32>
    %cst = arith.constant dense<0.000000e+00> : vector<16xf32>
    %4 = vector.multi_reduction <add>, %1, %cst [1] : vector<16x32xf32> to vector<16xf32>
    %5 = vector.shape_cast %4 : vector<16xf32> to vector<16x1xf32>
    %cst_3 = arith.constant 3.200000e+01 : f32
    %6 = vector.broadcast %cst_3 : f32 to vector<16x1xf32>
    %7 = arith.divf %5, %6 : vector<16x1xf32>
    %8 = vector.broadcast %7 : vector<16x1xf32> to vector<16x32xf32>
    %9 = arith.subf %1, %8 : vector<16x32xf32>
    %10 = arith.mulf %9, %9 : vector<16x32xf32>
    %cst_4 = arith.constant dense<0.000000e+00> : vector<16xf32>
    %11 = vector.multi_reduction <add>, %10, %cst_4 [1] : vector<16x32xf32> to vector<16xf32>
    %12 = vector.shape_cast %11 : vector<16xf32> to vector<16x1xf32>
    %cst_5 = arith.constant 3.200000e+01 : f32
    %13 = vector.broadcast %cst_5 : f32 to vector<16x1xf32>
    %14 = arith.divf %12, %13 : vector<16x1xf32>
    %cst_6 = arith.constant 9.99999996E-13 : f32
    %15 = vector.broadcast %cst_6 : f32 to vector<16x1xf32>
    %16 = arith.addf %14, %15 : vector<16x1xf32>
    %17 = math.rsqrt %16 : vector<16x1xf32>
    %18 = vector.broadcast %17 : vector<16x1xf32> to vector<16x32xf32>
    %19 = arith.mulf %9, %18 : vector<16x32xf32>
    %20 = vector.broadcast %2 : vector<1x32xf32> to vector<16x32xf32>
    %21 = arith.mulf %19, %20 : vector<16x32xf32>
    %22 = vector.broadcast %3 : vector<1x32xf32> to vector<16x32xf32>
    %23 = arith.addf %21, %22 : vector<16x32xf32>
    %c0_7 = arith.constant 0 : index
    %c0_8 = arith.constant 0 : index
    %c0_9 = arith.constant 0 : index
    %24 = vector.load %arg3[%c0_7, %c0_8, %c0_9] : memref<2x1x8xf32, #tpu.memory_space<vmem>>, vector<2x1x8xf32>
    %25 = vector.shape_cast %24 : vector<2x1x8xf32> to vector<2x1x8xf32>
    %26 = vector.broadcast %25 : vector<2x1x8xf32> to vector<2x8x8xf32>
    %c0_10 = arith.constant 0 : index
    %c0_11 = arith.constant 0 : index
    %c0_12 = arith.constant 0 : index
    %27 = vector.load %arg8[%c0_10, %c0_11, %c0_12] : memref<2x8x96xf32, #tpu.memory_space<vmem>>, vector<1x8x96xf32>
    %28 = vector.shape_cast %27 : vector<1x8x96xf32> to vector<8x96xf32>
    %29 = vector.extract_strided_slice %28 {offsets = [0, 0], sizes = [1, 96], strides = [1, 1]} : vector<8x96xf32> to vector<1x96xf32>
    %30 = vector.extract_strided_slice %28 {offsets = [1, 0], sizes = [1, 32], strides = [1, 1]} : vector<8x96xf32> to vector<1x32xf32>
    %31 = vector.extract_strided_slice %28 {offsets = [2, 0], sizes = [1, 32], strides = [1, 1]} : vector<8x96xf32> to vector<1x32xf32>
    %32 = vector.extract_strided_slice %28 {offsets = [3, 0], sizes = [1, 32], strides = [1, 1]} : vector<8x96xf32> to vector<1x32xf32>
    %33 = vector.extract_strided_slice %28 {offsets = [4, 0], sizes = [1, 64], strides = [1, 1]} : vector<8x96xf32> to vector<1x64xf32>
    %34 = vector.extract_strided_slice %28 {offsets = [5, 0], sizes = [1, 32], strides = [1, 1]} : vector<8x96xf32> to vector<1x32xf32>
    %35 = vector.extract_strided_slice %28 {offsets = [6, 0], sizes = [1, 32], strides = [1, 1]} : vector<8x96xf32> to vector<1x32xf32>
    %36 = vector.extract_strided_slice %28 {offsets = [7, 0], sizes = [1, 32], strides = [1, 1]} : vector<8x96xf32> to vector<1x32xf32>
    %c0_13 = arith.constant 0 : index
    %c0_14 = arith.constant 0 : index
    %c0_15 = arith.constant 0 : index
    %37 = vector.load %arg4[%c0_13, %c0_14, %c0_15] : memref<2x32x96xbf16, #tpu.memory_space<vmem>>, vector<1x32x96xbf16>
    %38 = vector.shape_cast %37 : vector<1x32x96xbf16> to vector<32x96xbf16>
    %39 = arith.truncf %23 : vector<16x32xf32> to vector<16x32xbf16>
    %cst_16 = arith.constant dense<0.000000e+00> : vector<16x96xf32>
    %40 = tpu.matmul %39, %38, %cst_16 {dimension_numbers = #tpu.dot_dimension_numbers<[1], [0], [0], [1], [0, 0, 1, 1], [], []>} : vector<16x32xbf16>, vector<32x96xbf16>, vector<16x96xf32> -> vector<16x96xf32>
    %41 = vector.broadcast %29 : vector<1x96xf32> to vector<16x96xf32>
    %42 = arith.addf %40, %41 : vector<16x96xf32>
    %c0_17 = arith.constant 0 : index
    %c0_18 = arith.constant 0 : index
    %c0_19 = arith.constant 0 : index
    %43 = vector.load %arg5[%c0_17, %c0_18, %c0_19] : memref<2x32x32xbf16, #tpu.memory_space<vmem>>, vector<1x32x32xbf16>
    %44 = vector.shape_cast %43 : vector<1x32x32xbf16> to vector<32x32xbf16>
    %cst_20 = arith.constant 0.000000e+00 : f32
    %45 = vector.broadcast %cst_20 : f32 to vector<16x32xf32>
    %46 = vector.extract_strided_slice %42 {offsets = [0, 0], sizes = [16, 16], strides = [1, 1]} : vector<16x96xf32> to vector<16x16xf32>
    %47 = vector.shape_cast %46 : vector<16x16xf32> to vector<2x8x16xf32>
    %48 = vector.extract_strided_slice %42 {offsets = [0, 32], sizes = [16, 16], strides = [1, 1]} : vector<16x96xf32> to vector<16x16xf32>
    %49 = vector.shape_cast %48 : vector<16x16xf32> to vector<2x8x16xf32>
    %50 = vector.extract_strided_slice %42 {offsets = [0, 64], sizes = [16, 16], strides = [1, 1]} : vector<16x96xf32> to vector<16x16xf32>
    %51 = vector.shape_cast %50 : vector<16x16xf32> to vector<2x8x16xf32>
    %52 = arith.truncf %47 : vector<2x8x16xf32> to vector<2x8x16xbf16>
    %53 = arith.truncf %49 : vector<2x8x16xf32> to vector<2x8x16xbf16>
    "tpu.trace_start"() <{level = 10 : i32, message = "bqd,bkd->bqk"}> : () -> ()
    %cst_21 = arith.constant dense<0.000000e+00> : vector<2x8x8xf32>
    %54 = tpu.matmul %52, %53, %cst_21 {dimension_numbers = #tpu.dot_dimension_numbers<[2], [2], [1], [1], [0, 0, 0, 1, 1, 1], [0], [0]>} : vector<2x8x16xbf16>, vector<2x8x16xbf16>, vector<2x8x8xf32> -> vector<2x8x8xf32>
    "tpu.trace_stop"() : () -> ()
    %55 = arith.addf %54, %26 : vector<2x8x8xf32>
    %cst_22 = arith.constant dense<0xFF800000> : vector<2x8xf32>
    %56 = vector.multi_reduction <maximumf>, %55, %cst_22 [2] : vector<2x8x8xf32> to vector<2x8xf32>
    %57 = vector.shape_cast %56 : vector<2x8xf32> to vector<2x8x1xf32>
    %58 = vector.broadcast %57 : vector<2x8x1xf32> to vector<2x8x8xf32>
    %59 = arith.subf %55, %58 : vector<2x8x8xf32>
    %60 = math.exp %59 : vector<2x8x8xf32>
    %cst_23 = arith.constant dense<0.000000e+00> : vector<2x8xf32>
    %61 = vector.multi_reduction <add>, %60, %cst_23 [2] : vector<2x8x8xf32> to vector<2x8xf32>
    %62 = vector.shape_cast %61 : vector<2x8xf32> to vector<2x8x1xf32>
    %63 = vector.broadcast %62 : vector<2x8x1xf32> to vector<2x8x8xf32>
    %64 = arith.divf %60, %63 : vector<2x8x8xf32>
    %65 = arith.truncf %64 : vector<2x8x8xf32> to vector<2x8x8xbf16>
    %66 = arith.truncf %51 : vector<2x8x16xf32> to vector<2x8x16xbf16>
    "tpu.trace_start"() <{level = 10 : i32, message = "bqk,bkd->bqd"}> : () -> ()
    %cst_24 = arith.constant dense<0.000000e+00> : vector<2x8x16xf32>
    %67 = tpu.matmul %65, %66, %cst_24 {dimension_numbers = #tpu.dot_dimension_numbers<[2], [1], [1], [2], [0, 0, 0, 1, 1, 2], [0], [0]>} : vector<2x8x8xbf16>, vector<2x8x16xbf16>, vector<2x8x16xf32> -> vector<2x8x16xf32>
    "tpu.trace_stop"() : () -> ()
    %68 = vector.shape_cast %67 : vector<2x8x16xf32> to vector<16x16xf32>
    %69 = vector.extract_strided_slice %44 {offsets = [0, 0], sizes = [16, 32], strides = [1, 1]} : vector<32x32xbf16> to vector<16x32xbf16>
    %70 = arith.truncf %68 : vector<16x16xf32> to vector<16x16xbf16>
    %cst_25 = arith.constant dense<0.000000e+00> : vector<16x32xf32>
    %71 = tpu.matmul %70, %69, %cst_25 {dimension_numbers = #tpu.dot_dimension_numbers<[1], [0], [0], [1], [0, 0, 1, 1], [], []>} : vector<16x16xbf16>, vector<16x32xbf16>, vector<16x32xf32> -> vector<16x32xf32>
    %72 = arith.addf %45, %71 : vector<16x32xf32>
    %73 = vector.extract_strided_slice %42 {offsets = [0, 16], sizes = [16, 16], strides = [1, 1]} : vector<16x96xf32> to vector<16x16xf32>
    %74 = vector.shape_cast %73 : vector<16x16xf32> to vector<2x8x16xf32>
    %75 = vector.extract_strided_slice %42 {offsets = [0, 48], sizes = [16, 16], strides = [1, 1]} : vector<16x96xf32> to vector<16x16xf32>
    %76 = vector.shape_cast %75 : vector<16x16xf32> to vector<2x8x16xf32>
    %77 = vector.extract_strided_slice %42 {offsets = [0, 80], sizes = [16, 16], strides = [1, 1]} : vector<16x96xf32> to vector<16x16xf32>
    %78 = vector.shape_cast %77 : vector<16x16xf32> to vector<2x8x16xf32>
    %79 = arith.truncf %74 : vector<2x8x16xf32> to vector<2x8x16xbf16>
    %80 = arith.truncf %76 : vector<2x8x16xf32> to vector<2x8x16xbf16>
    "tpu.trace_start"() <{level = 10 : i32, message = "bqd,bkd->bqk"}> : () -> ()
    %cst_26 = arith.constant dense<0.000000e+00> : vector<2x8x8xf32>
    %81 = tpu.matmul %79, %80, %cst_26 {dimension_numbers = #tpu.dot_dimension_numbers<[2], [2], [1], [1], [0, 0, 0, 1, 1, 1], [0], [0]>} : vector<2x8x16xbf16>, vector<2x8x16xbf16>, vector<2x8x8xf32> -> vector<2x8x8xf32>
    "tpu.trace_stop"() : () -> ()
    %82 = arith.addf %81, %26 : vector<2x8x8xf32>
    %cst_27 = arith.constant dense<0xFF800000> : vector<2x8xf32>
    %83 = vector.multi_reduction <maximumf>, %82, %cst_27 [2] : vector<2x8x8xf32> to vector<2x8xf32>
    %84 = vector.shape_cast %83 : vector<2x8xf32> to vector<2x8x1xf32>
    %85 = vector.broadcast %84 : vector<2x8x1xf32> to vector<2x8x8xf32>
    %86 = arith.subf %82, %85 : vector<2x8x8xf32>
    %87 = math.exp %86 : vector<2x8x8xf32>
    %cst_28 = arith.constant dense<0.000000e+00> : vector<2x8xf32>
    %88 = vector.multi_reduction <add>, %87, %cst_28 [2] : vector<2x8x8xf32> to vector<2x8xf32>
    %89 = vector.shape_cast %88 : vector<2x8xf32> to vector<2x8x1xf32>
    %90 = vector.broadcast %89 : vector<2x8x1xf32> to vector<2x8x8xf32>
    %91 = arith.divf %87, %90 : vector<2x8x8xf32>
    %92 = arith.truncf %91 : vector<2x8x8xf32> to vector<2x8x8xbf16>
    %93 = arith.truncf %78 : vector<2x8x16xf32> to vector<2x8x16xbf16>
    "tpu.trace_start"() <{level = 10 : i32, message = "bqk,bkd->bqd"}> : () -> ()
    %cst_29 = arith.constant dense<0.000000e+00> : vector<2x8x16xf32>
    %94 = tpu.matmul %92, %93, %cst_29 {dimension_numbers = #tpu.dot_dimension_numbers<[2], [1], [1], [2], [0, 0, 0, 1, 1, 2], [0], [0]>} : vector<2x8x8xbf16>, vector<2x8x16xbf16>, vector<2x8x16xf32> -> vector<2x8x16xf32>
    "tpu.trace_stop"() : () -> ()
    %95 = vector.shape_cast %94 : vector<2x8x16xf32> to vector<16x16xf32>
    %96 = vector.extract_strided_slice %44 {offsets = [16, 0], sizes = [16, 32], strides = [1, 1]} : vector<32x32xbf16> to vector<16x32xbf16>
    %97 = arith.truncf %95 : vector<16x16xf32> to vector<16x16xbf16>
    %cst_30 = arith.constant dense<0.000000e+00> : vector<16x32xf32>
    %98 = tpu.matmul %97, %96, %cst_30 {dimension_numbers = #tpu.dot_dimension_numbers<[1], [0], [0], [1], [0, 0, 1, 1], [], []>} : vector<16x16xbf16>, vector<16x32xbf16>, vector<16x32xf32> -> vector<16x32xf32>
    %99 = arith.addf %72, %98 : vector<16x32xf32>
    %100 = vector.broadcast %30 : vector<1x32xf32> to vector<16x32xf32>
    %101 = arith.addf %99, %100 : vector<16x32xf32>
    %102 = arith.addf %101, %23 : vector<16x32xf32>
    %cst_31 = arith.constant dense<0.000000e+00> : vector<16xf32>
    %103 = vector.multi_reduction <add>, %102, %cst_31 [1] : vector<16x32xf32> to vector<16xf32>
    %104 = vector.shape_cast %103 : vector<16xf32> to vector<16x1xf32>
    %cst_32 = arith.constant 3.200000e+01 : f32
    %105 = vector.broadcast %cst_32 : f32 to vector<16x1xf32>
    %106 = arith.divf %104, %105 : vector<16x1xf32>
    %107 = vector.broadcast %106 : vector<16x1xf32> to vector<16x32xf32>
    %108 = arith.subf %102, %107 : vector<16x32xf32>
    %109 = arith.mulf %108, %108 : vector<16x32xf32>
    %cst_33 = arith.constant dense<0.000000e+00> : vector<16xf32>
    %110 = vector.multi_reduction <add>, %109, %cst_33 [1] : vector<16x32xf32> to vector<16xf32>
    %111 = vector.shape_cast %110 : vector<16xf32> to vector<16x1xf32>
    %cst_34 = arith.constant 3.200000e+01 : f32
    %112 = vector.broadcast %cst_34 : f32 to vector<16x1xf32>
    %113 = arith.divf %111, %112 : vector<16x1xf32>
    %cst_35 = arith.constant 9.99999996E-13 : f32
    %114 = vector.broadcast %cst_35 : f32 to vector<16x1xf32>
    %115 = arith.addf %113, %114 : vector<16x1xf32>
    %116 = math.rsqrt %115 : vector<16x1xf32>
    %117 = vector.broadcast %116 : vector<16x1xf32> to vector<16x32xf32>
    %118 = arith.mulf %108, %117 : vector<16x32xf32>
    %119 = vector.broadcast %31 : vector<1x32xf32> to vector<16x32xf32>
    %120 = arith.mulf %118, %119 : vector<16x32xf32>
    %121 = vector.broadcast %32 : vector<1x32xf32> to vector<16x32xf32>
    %122 = arith.addf %120, %121 : vector<16x32xf32>
    %c0_36 = arith.constant 0 : index
    %c0_37 = arith.constant 0 : index
    %c0_38 = arith.constant 0 : index
    %123 = vector.load %arg6[%c0_36, %c0_37, %c0_38] : memref<2x32x64xbf16, #tpu.memory_space<vmem>>, vector<1x32x64xbf16>
    %124 = vector.shape_cast %123 : vector<1x32x64xbf16> to vector<32x64xbf16>
    %125 = arith.truncf %122 : vector<16x32xf32> to vector<16x32xbf16>
    %cst_39 = arith.constant dense<0.000000e+00> : vector<16x64xf32>
    %126 = tpu.matmul %125, %124, %cst_39 {dimension_numbers = #tpu.dot_dimension_numbers<[1], [0], [0], [1], [0, 0, 1, 1], [], []>} : vector<16x32xbf16>, vector<32x64xbf16>, vector<16x64xf32> -> vector<16x64xf32>
    %127 = vector.broadcast %33 : vector<1x64xf32> to vector<16x64xf32>
    %128 = arith.addf %126, %127 : vector<16x64xf32>
    %cst_40 = arith.constant 0.707106769 : f32
    %129 = vector.broadcast %cst_40 : f32 to vector<16x64xf32>
    %130 = arith.mulf %128, %129 : vector<16x64xf32>
    %131 = math.absf %130 : vector<16x64xf32>
    %cst_41 = arith.constant 0.327591091 : f32
    %132 = vector.broadcast %cst_41 : f32 to vector<16x64xf32>
    %133 = arith.mulf %132, %131 : vector<16x64xf32>
    %cst_42 = arith.constant 1.000000e+00 : f32
    %134 = vector.broadcast %cst_42 : f32 to vector<16x64xf32>
    %135 = arith.addf %134, %133 : vector<16x64xf32>
    %cst_43 = arith.constant 1.000000e+00 : f32
    %136 = vector.broadcast %cst_43 : f32 to vector<16x64xf32>
    %137 = arith.divf %136, %135 : vector<16x64xf32>
    %cst_44 = arith.constant 1.06140542 : f32
    %138 = vector.broadcast %cst_44 : f32 to vector<16x64xf32>
    %139 = arith.mulf %138, %137 : vector<16x64xf32>
    %cst_45 = arith.constant -1.45315206 : f32
    %140 = vector.broadcast %cst_45 : f32 to vector<16x64xf32>
    %141 = arith.addf %139, %140 : vector<16x64xf32>
    %142 = arith.mulf %141, %137 : vector<16x64xf32>
    %cst_46 = arith.constant 1.42141378 : f32
    %143 = vector.broadcast %cst_46 : f32 to vector<16x64xf32>
    %144 = arith.addf %142, %143 : vector<16x64xf32>
    %145 = arith.mulf %144, %137 : vector<16x64xf32>
    %cst_47 = arith.constant -0.284496725 : f32
    %146 = vector.broadcast %cst_47 : f32 to vector<16x64xf32>
    %147 = arith.addf %145, %146 : vector<16x64xf32>
    %148 = arith.mulf %147, %137 : vector<16x64xf32>
    %cst_48 = arith.constant 0.254829586 : f32
    %149 = vector.broadcast %cst_48 : f32 to vector<16x64xf32>
    %150 = arith.addf %148, %149 : vector<16x64xf32>
    %151 = arith.mulf %150, %137 : vector<16x64xf32>
    %cst_49 = arith.constant 0.000000e+00 : f32
    %152 = vector.broadcast %cst_49 : f32 to vector<16x64xf32>
    %153 = arith.subf %152, %131 : vector<16x64xf32>
    %154 = arith.mulf %153, %131 : vector<16x64xf32>
    %155 = math.exp %154 : vector<16x64xf32>
    %156 = arith.mulf %151, %155 : vector<16x64xf32>
    %cst_50 = arith.constant 1.000000e+00 : f32
    %157 = vector.broadcast %cst_50 : f32 to vector<16x64xf32>
    %158 = arith.subf %157, %156 : vector<16x64xf32>
    %cst_51 = arith.constant 0.000000e+00 : f32
    %159 = vector.broadcast %cst_51 : f32 to vector<16x64xf32>
    %160 = arith.cmpf oge, %130, %159 : vector<16x64xf32>
    %cst_52 = arith.constant 0.000000e+00 : f32
    %161 = vector.broadcast %cst_52 : f32 to vector<16x64xf32>
    %162 = arith.subf %161, %158 : vector<16x64xf32>
    %163 = arith.select %160, %158, %162 : vector<16x64xi1>, vector<16x64xf32>
    %cst_53 = arith.constant 5.000000e-01 : f32
    %164 = vector.broadcast %cst_53 : f32 to vector<16x64xf32>
    %165 = arith.mulf %164, %128 : vector<16x64xf32>
    %cst_54 = arith.constant 1.000000e+00 : f32
    %166 = vector.broadcast %cst_54 : f32 to vector<16x64xf32>
    %167 = arith.addf %166, %163 : vector<16x64xf32>
    %168 = arith.mulf %165, %167 : vector<16x64xf32>
    %c0_55 = arith.constant 0 : index
    %c0_56 = arith.constant 0 : index
    %c0_57 = arith.constant 0 : index
    %169 = vector.load %arg7[%c0_55, %c0_56, %c0_57] : memref<2x64x32xbf16, #tpu.memory_space<vmem>>, vector<1x64x32xbf16>
    %170 = vector.shape_cast %169 : vector<1x64x32xbf16> to vector<64x32xbf16>
    %171 = arith.truncf %168 : vector<16x64xf32> to vector<16x64xbf16>
    %cst_58 = arith.constant dense<0.000000e+00> : vector<16x32xf32>
    %172 = tpu.matmul %171, %170, %cst_58 {dimension_numbers = #tpu.dot_dimension_numbers<[1], [0], [0], [1], [0, 0, 1, 1], [], []>} : vector<16x64xbf16>, vector<64x32xbf16>, vector<16x32xf32> -> vector<16x32xf32>
    %173 = vector.broadcast %34 : vector<1x32xf32> to vector<16x32xf32>
    %174 = arith.addf %172, %173 : vector<16x32xf32>
    %175 = arith.addf %174, %122 : vector<16x32xf32>
    %cst_59 = arith.constant dense<0.000000e+00> : vector<16xf32>
    %176 = vector.multi_reduction <add>, %175, %cst_59 [1] : vector<16x32xf32> to vector<16xf32>
    %177 = vector.shape_cast %176 : vector<16xf32> to vector<16x1xf32>
    %cst_60 = arith.constant 3.200000e+01 : f32
    %178 = vector.broadcast %cst_60 : f32 to vector<16x1xf32>
    %179 = arith.divf %177, %178 : vector<16x1xf32>
    %180 = vector.broadcast %179 : vector<16x1xf32> to vector<16x32xf32>
    %181 = arith.subf %175, %180 : vector<16x32xf32>
    %182 = arith.mulf %181, %181 : vector<16x32xf32>
    %cst_61 = arith.constant dense<0.000000e+00> : vector<16xf32>
    %183 = vector.multi_reduction <add>, %182, %cst_61 [1] : vector<16x32xf32> to vector<16xf32>
    %184 = vector.shape_cast %183 : vector<16xf32> to vector<16x1xf32>
    %cst_62 = arith.constant 3.200000e+01 : f32
    %185 = vector.broadcast %cst_62 : f32 to vector<16x1xf32>
    %186 = arith.divf %184, %185 : vector<16x1xf32>
    %cst_63 = arith.constant 9.99999996E-13 : f32
    %187 = vector.broadcast %cst_63 : f32 to vector<16x1xf32>
    %188 = arith.addf %186, %187 : vector<16x1xf32>
    %189 = math.rsqrt %188 : vector<16x1xf32>
    %190 = vector.broadcast %189 : vector<16x1xf32> to vector<16x32xf32>
    %191 = arith.mulf %181, %190 : vector<16x32xf32>
    %192 = vector.broadcast %35 : vector<1x32xf32> to vector<16x32xf32>
    %193 = arith.mulf %191, %192 : vector<16x32xf32>
    %194 = vector.broadcast %36 : vector<1x32xf32> to vector<16x32xf32>
    %195 = arith.addf %193, %194 : vector<16x32xf32>
    %c1 = arith.constant 1 : index
    %c0_64 = arith.constant 0 : index
    %c0_65 = arith.constant 0 : index
    %196 = vector.load %arg8[%c1, %c0_64, %c0_65] : memref<2x8x96xf32, #tpu.memory_space<vmem>>, vector<1x8x96xf32>
    %197 = vector.shape_cast %196 : vector<1x8x96xf32> to vector<8x96xf32>
    %198 = vector.extract_strided_slice %197 {offsets = [0, 0], sizes = [1, 96], strides = [1, 1]} : vector<8x96xf32> to vector<1x96xf32>
    %199 = vector.extract_strided_slice %197 {offsets = [1, 0], sizes = [1, 32], strides = [1, 1]} : vector<8x96xf32> to vector<1x32xf32>
    %200 = vector.extract_strided_slice %197 {offsets = [2, 0], sizes = [1, 32], strides = [1, 1]} : vector<8x96xf32> to vector<1x32xf32>
    %201 = vector.extract_strided_slice %197 {offsets = [3, 0], sizes = [1, 32], strides = [1, 1]} : vector<8x96xf32> to vector<1x32xf32>
    %202 = vector.extract_strided_slice %197 {offsets = [4, 0], sizes = [1, 64], strides = [1, 1]} : vector<8x96xf32> to vector<1x64xf32>
    %203 = vector.extract_strided_slice %197 {offsets = [5, 0], sizes = [1, 32], strides = [1, 1]} : vector<8x96xf32> to vector<1x32xf32>
    %204 = vector.extract_strided_slice %197 {offsets = [6, 0], sizes = [1, 32], strides = [1, 1]} : vector<8x96xf32> to vector<1x32xf32>
    %205 = vector.extract_strided_slice %197 {offsets = [7, 0], sizes = [1, 32], strides = [1, 1]} : vector<8x96xf32> to vector<1x32xf32>
    %c1_66 = arith.constant 1 : index
    %c0_67 = arith.constant 0 : index
    %c0_68 = arith.constant 0 : index
    %206 = vector.load %arg4[%c1_66, %c0_67, %c0_68] : memref<2x32x96xbf16, #tpu.memory_space<vmem>>, vector<1x32x96xbf16>
    %207 = vector.shape_cast %206 : vector<1x32x96xbf16> to vector<32x96xbf16>
    %208 = arith.truncf %195 : vector<16x32xf32> to vector<16x32xbf16>
    %cst_69 = arith.constant dense<0.000000e+00> : vector<16x96xf32>
    %209 = tpu.matmul %208, %207, %cst_69 {dimension_numbers = #tpu.dot_dimension_numbers<[1], [0], [0], [1], [0, 0, 1, 1], [], []>} : vector<16x32xbf16>, vector<32x96xbf16>, vector<16x96xf32> -> vector<16x96xf32>
    %210 = vector.broadcast %198 : vector<1x96xf32> to vector<16x96xf32>
    %211 = arith.addf %209, %210 : vector<16x96xf32>
    %c1_70 = arith.constant 1 : index
    %c0_71 = arith.constant 0 : index
    %c0_72 = arith.constant 0 : index
    %212 = vector.load %arg5[%c1_70, %c0_71, %c0_72] : memref<2x32x32xbf16, #tpu.memory_space<vmem>>, vector<1x32x32xbf16>
    %213 = vector.shape_cast %212 : vector<1x32x32xbf16> to vector<32x32xbf16>
    %cst_73 = arith.constant 0.000000e+00 : f32
    %214 = vector.broadcast %cst_73 : f32 to vector<16x32xf32>
    %215 = vector.extract_strided_slice %211 {offsets = [0, 0], sizes = [16, 16], strides = [1, 1]} : vector<16x96xf32> to vector<16x16xf32>
    %216 = vector.shape_cast %215 : vector<16x16xf32> to vector<2x8x16xf32>
    %217 = vector.extract_strided_slice %211 {offsets = [0, 32], sizes = [16, 16], strides = [1, 1]} : vector<16x96xf32> to vector<16x16xf32>
    %218 = vector.shape_cast %217 : vector<16x16xf32> to vector<2x8x16xf32>
    %219 = vector.extract_strided_slice %211 {offsets = [0, 64], sizes = [16, 16], strides = [1, 1]} : vector<16x96xf32> to vector<16x16xf32>
    %220 = vector.shape_cast %219 : vector<16x16xf32> to vector<2x8x16xf32>
    %221 = arith.truncf %216 : vector<2x8x16xf32> to vector<2x8x16xbf16>
    %222 = arith.truncf %218 : vector<2x8x16xf32> to vector<2x8x16xbf16>
    "tpu.trace_start"() <{level = 10 : i32, message = "bqd,bkd->bqk"}> : () -> ()
    %cst_74 = arith.constant dense<0.000000e+00> : vector<2x8x8xf32>
    %223 = tpu.matmul %221, %222, %cst_74 {dimension_numbers = #tpu.dot_dimension_numbers<[2], [2], [1], [1], [0, 0, 0, 1, 1, 1], [0], [0]>} : vector<2x8x16xbf16>, vector<2x8x16xbf16>, vector<2x8x8xf32> -> vector<2x8x8xf32>
    "tpu.trace_stop"() : () -> ()
    %224 = arith.addf %223, %26 : vector<2x8x8xf32>
    %cst_75 = arith.constant dense<0xFF800000> : vector<2x8xf32>
    %225 = vector.multi_reduction <maximumf>, %224, %cst_75 [2] : vector<2x8x8xf32> to vector<2x8xf32>
    %226 = vector.shape_cast %225 : vector<2x8xf32> to vector<2x8x1xf32>
    %227 = vector.broadcast %226 : vector<2x8x1xf32> to vector<2x8x8xf32>
    %228 = arith.subf %224, %227 : vector<2x8x8xf32>
    %229 = math.exp %228 : vector<2x8x8xf32>
    %cst_76 = arith.constant dense<0.000000e+00> : vector<2x8xf32>
    %230 = vector.multi_reduction <add>, %229, %cst_76 [2] : vector<2x8x8xf32> to vector<2x8xf32>
    %231 = vector.shape_cast %230 : vector<2x8xf32> to vector<2x8x1xf32>
    %232 = vector.broadcast %231 : vector<2x8x1xf32> to vector<2x8x8xf32>
    %233 = arith.divf %229, %232 : vector<2x8x8xf32>
    %234 = arith.truncf %233 : vector<2x8x8xf32> to vector<2x8x8xbf16>
    %235 = arith.truncf %220 : vector<2x8x16xf32> to vector<2x8x16xbf16>
    "tpu.trace_start"() <{level = 10 : i32, message = "bqk,bkd->bqd"}> : () -> ()
    %cst_77 = arith.constant dense<0.000000e+00> : vector<2x8x16xf32>
    %236 = tpu.matmul %234, %235, %cst_77 {dimension_numbers = #tpu.dot_dimension_numbers<[2], [1], [1], [2], [0, 0, 0, 1, 1, 2], [0], [0]>} : vector<2x8x8xbf16>, vector<2x8x16xbf16>, vector<2x8x16xf32> -> vector<2x8x16xf32>
    "tpu.trace_stop"() : () -> ()
    %237 = vector.shape_cast %236 : vector<2x8x16xf32> to vector<16x16xf32>
    %238 = vector.extract_strided_slice %213 {offsets = [0, 0], sizes = [16, 32], strides = [1, 1]} : vector<32x32xbf16> to vector<16x32xbf16>
    %239 = arith.truncf %237 : vector<16x16xf32> to vector<16x16xbf16>
    %cst_78 = arith.constant dense<0.000000e+00> : vector<16x32xf32>
    %240 = tpu.matmul %239, %238, %cst_78 {dimension_numbers = #tpu.dot_dimension_numbers<[1], [0], [0], [1], [0, 0, 1, 1], [], []>} : vector<16x16xbf16>, vector<16x32xbf16>, vector<16x32xf32> -> vector<16x32xf32>
    %241 = arith.addf %214, %240 : vector<16x32xf32>
    %242 = vector.extract_strided_slice %211 {offsets = [0, 16], sizes = [16, 16], strides = [1, 1]} : vector<16x96xf32> to vector<16x16xf32>
    %243 = vector.shape_cast %242 : vector<16x16xf32> to vector<2x8x16xf32>
    %244 = vector.extract_strided_slice %211 {offsets = [0, 48], sizes = [16, 16], strides = [1, 1]} : vector<16x96xf32> to vector<16x16xf32>
    %245 = vector.shape_cast %244 : vector<16x16xf32> to vector<2x8x16xf32>
    %246 = vector.extract_strided_slice %211 {offsets = [0, 80], sizes = [16, 16], strides = [1, 1]} : vector<16x96xf32> to vector<16x16xf32>
    %247 = vector.shape_cast %246 : vector<16x16xf32> to vector<2x8x16xf32>
    %248 = arith.truncf %243 : vector<2x8x16xf32> to vector<2x8x16xbf16>
    %249 = arith.truncf %245 : vector<2x8x16xf32> to vector<2x8x16xbf16>
    "tpu.trace_start"() <{level = 10 : i32, message = "bqd,bkd->bqk"}> : () -> ()
    %cst_79 = arith.constant dense<0.000000e+00> : vector<2x8x8xf32>
    %250 = tpu.matmul %248, %249, %cst_79 {dimension_numbers = #tpu.dot_dimension_numbers<[2], [2], [1], [1], [0, 0, 0, 1, 1, 1], [0], [0]>} : vector<2x8x16xbf16>, vector<2x8x16xbf16>, vector<2x8x8xf32> -> vector<2x8x8xf32>
    "tpu.trace_stop"() : () -> ()
    %251 = arith.addf %250, %26 : vector<2x8x8xf32>
    %cst_80 = arith.constant dense<0xFF800000> : vector<2x8xf32>
    %252 = vector.multi_reduction <maximumf>, %251, %cst_80 [2] : vector<2x8x8xf32> to vector<2x8xf32>
    %253 = vector.shape_cast %252 : vector<2x8xf32> to vector<2x8x1xf32>
    %254 = vector.broadcast %253 : vector<2x8x1xf32> to vector<2x8x8xf32>
    %255 = arith.subf %251, %254 : vector<2x8x8xf32>
    %256 = math.exp %255 : vector<2x8x8xf32>
    %cst_81 = arith.constant dense<0.000000e+00> : vector<2x8xf32>
    %257 = vector.multi_reduction <add>, %256, %cst_81 [2] : vector<2x8x8xf32> to vector<2x8xf32>
    %258 = vector.shape_cast %257 : vector<2x8xf32> to vector<2x8x1xf32>
    %259 = vector.broadcast %258 : vector<2x8x1xf32> to vector<2x8x8xf32>
    %260 = arith.divf %256, %259 : vector<2x8x8xf32>
    %261 = arith.truncf %260 : vector<2x8x8xf32> to vector<2x8x8xbf16>
    %262 = arith.truncf %247 : vector<2x8x16xf32> to vector<2x8x16xbf16>
    "tpu.trace_start"() <{level = 10 : i32, message = "bqk,bkd->bqd"}> : () -> ()
    %cst_82 = arith.constant dense<0.000000e+00> : vector<2x8x16xf32>
    %263 = tpu.matmul %261, %262, %cst_82 {dimension_numbers = #tpu.dot_dimension_numbers<[2], [1], [1], [2], [0, 0, 0, 1, 1, 2], [0], [0]>} : vector<2x8x8xbf16>, vector<2x8x16xbf16>, vector<2x8x16xf32> -> vector<2x8x16xf32>
    "tpu.trace_stop"() : () -> ()
    %264 = vector.shape_cast %263 : vector<2x8x16xf32> to vector<16x16xf32>
    %265 = vector.extract_strided_slice %213 {offsets = [16, 0], sizes = [16, 32], strides = [1, 1]} : vector<32x32xbf16> to vector<16x32xbf16>
    %266 = arith.truncf %264 : vector<16x16xf32> to vector<16x16xbf16>
    %cst_83 = arith.constant dense<0.000000e+00> : vector<16x32xf32>
    %267 = tpu.matmul %266, %265, %cst_83 {dimension_numbers = #tpu.dot_dimension_numbers<[1], [0], [0], [1], [0, 0, 1, 1], [], []>} : vector<16x16xbf16>, vector<16x32xbf16>, vector<16x32xf32> -> vector<16x32xf32>
    %268 = arith.addf %241, %267 : vector<16x32xf32>
    %269 = vector.broadcast %199 : vector<1x32xf32> to vector<16x32xf32>
    %270 = arith.addf %268, %269 : vector<16x32xf32>
    %271 = arith.addf %270, %195 : vector<16x32xf32>
    %cst_84 = arith.constant dense<0.000000e+00> : vector<16xf32>
    %272 = vector.multi_reduction <add>, %271, %cst_84 [1] : vector<16x32xf32> to vector<16xf32>
    %273 = vector.shape_cast %272 : vector<16xf32> to vector<16x1xf32>
    %cst_85 = arith.constant 3.200000e+01 : f32
    %274 = vector.broadcast %cst_85 : f32 to vector<16x1xf32>
    %275 = arith.divf %273, %274 : vector<16x1xf32>
    %276 = vector.broadcast %275 : vector<16x1xf32> to vector<16x32xf32>
    %277 = arith.subf %271, %276 : vector<16x32xf32>
    %278 = arith.mulf %277, %277 : vector<16x32xf32>
    %cst_86 = arith.constant dense<0.000000e+00> : vector<16xf32>
    %279 = vector.multi_reduction <add>, %278, %cst_86 [1] : vector<16x32xf32> to vector<16xf32>
    %280 = vector.shape_cast %279 : vector<16xf32> to vector<16x1xf32>
    %cst_87 = arith.constant 3.200000e+01 : f32
    %281 = vector.broadcast %cst_87 : f32 to vector<16x1xf32>
    %282 = arith.divf %280, %281 : vector<16x1xf32>
    %cst_88 = arith.constant 9.99999996E-13 : f32
    %283 = vector.broadcast %cst_88 : f32 to vector<16x1xf32>
    %284 = arith.addf %282, %283 : vector<16x1xf32>
    %285 = math.rsqrt %284 : vector<16x1xf32>
    %286 = vector.broadcast %285 : vector<16x1xf32> to vector<16x32xf32>
    %287 = arith.mulf %277, %286 : vector<16x32xf32>
    %288 = vector.broadcast %200 : vector<1x32xf32> to vector<16x32xf32>
    %289 = arith.mulf %287, %288 : vector<16x32xf32>
    %290 = vector.broadcast %201 : vector<1x32xf32> to vector<16x32xf32>
    %291 = arith.addf %289, %290 : vector<16x32xf32>
    %c1_89 = arith.constant 1 : index
    %c0_90 = arith.constant 0 : index
    %c0_91 = arith.constant 0 : index
    %292 = vector.load %arg6[%c1_89, %c0_90, %c0_91] : memref<2x32x64xbf16, #tpu.memory_space<vmem>>, vector<1x32x64xbf16>
    %293 = vector.shape_cast %292 : vector<1x32x64xbf16> to vector<32x64xbf16>
    %294 = arith.truncf %291 : vector<16x32xf32> to vector<16x32xbf16>
    %cst_92 = arith.constant dense<0.000000e+00> : vector<16x64xf32>
    %295 = tpu.matmul %294, %293, %cst_92 {dimension_numbers = #tpu.dot_dimension_numbers<[1], [0], [0], [1], [0, 0, 1, 1], [], []>} : vector<16x32xbf16>, vector<32x64xbf16>, vector<16x64xf32> -> vector<16x64xf32>
    %296 = vector.broadcast %202 : vector<1x64xf32> to vector<16x64xf32>
    %297 = arith.addf %295, %296 : vector<16x64xf32>
    %cst_93 = arith.constant 0.707106769 : f32
    %298 = vector.broadcast %cst_93 : f32 to vector<16x64xf32>
    %299 = arith.mulf %297, %298 : vector<16x64xf32>
    %300 = math.absf %299 : vector<16x64xf32>
    %cst_94 = arith.constant 0.327591091 : f32
    %301 = vector.broadcast %cst_94 : f32 to vector<16x64xf32>
    %302 = arith.mulf %301, %300 : vector<16x64xf32>
    %cst_95 = arith.constant 1.000000e+00 : f32
    %303 = vector.broadcast %cst_95 : f32 to vector<16x64xf32>
    %304 = arith.addf %303, %302 : vector<16x64xf32>
    %cst_96 = arith.constant 1.000000e+00 : f32
    %305 = vector.broadcast %cst_96 : f32 to vector<16x64xf32>
    %306 = arith.divf %305, %304 : vector<16x64xf32>
    %cst_97 = arith.constant 1.06140542 : f32
    %307 = vector.broadcast %cst_97 : f32 to vector<16x64xf32>
    %308 = arith.mulf %307, %306 : vector<16x64xf32>
    %cst_98 = arith.constant -1.45315206 : f32
    %309 = vector.broadcast %cst_98 : f32 to vector<16x64xf32>
    %310 = arith.addf %308, %309 : vector<16x64xf32>
    %311 = arith.mulf %310, %306 : vector<16x64xf32>
    %cst_99 = arith.constant 1.42141378 : f32
    %312 = vector.broadcast %cst_99 : f32 to vector<16x64xf32>
    %313 = arith.addf %311, %312 : vector<16x64xf32>
    %314 = arith.mulf %313, %306 : vector<16x64xf32>
    %cst_100 = arith.constant -0.284496725 : f32
    %315 = vector.broadcast %cst_100 : f32 to vector<16x64xf32>
    %316 = arith.addf %314, %315 : vector<16x64xf32>
    %317 = arith.mulf %316, %306 : vector<16x64xf32>
    %cst_101 = arith.constant 0.254829586 : f32
    %318 = vector.broadcast %cst_101 : f32 to vector<16x64xf32>
    %319 = arith.addf %317, %318 : vector<16x64xf32>
    %320 = arith.mulf %319, %306 : vector<16x64xf32>
    %cst_102 = arith.constant 0.000000e+00 : f32
    %321 = vector.broadcast %cst_102 : f32 to vector<16x64xf32>
    %322 = arith.subf %321, %300 : vector<16x64xf32>
    %323 = arith.mulf %322, %300 : vector<16x64xf32>
    %324 = math.exp %323 : vector<16x64xf32>
    %325 = arith.mulf %320, %324 : vector<16x64xf32>
    %cst_103 = arith.constant 1.000000e+00 : f32
    %326 = vector.broadcast %cst_103 : f32 to vector<16x64xf32>
    %327 = arith.subf %326, %325 : vector<16x64xf32>
    %cst_104 = arith.constant 0.000000e+00 : f32
    %328 = vector.broadcast %cst_104 : f32 to vector<16x64xf32>
    %329 = arith.cmpf oge, %299, %328 : vector<16x64xf32>
    %cst_105 = arith.constant 0.000000e+00 : f32
    %330 = vector.broadcast %cst_105 : f32 to vector<16x64xf32>
    %331 = arith.subf %330, %327 : vector<16x64xf32>
    %332 = arith.select %329, %327, %331 : vector<16x64xi1>, vector<16x64xf32>
    %cst_106 = arith.constant 5.000000e-01 : f32
    %333 = vector.broadcast %cst_106 : f32 to vector<16x64xf32>
    %334 = arith.mulf %333, %297 : vector<16x64xf32>
    %cst_107 = arith.constant 1.000000e+00 : f32
    %335 = vector.broadcast %cst_107 : f32 to vector<16x64xf32>
    %336 = arith.addf %335, %332 : vector<16x64xf32>
    %337 = arith.mulf %334, %336 : vector<16x64xf32>
    %c1_108 = arith.constant 1 : index
    %c0_109 = arith.constant 0 : index
    %c0_110 = arith.constant 0 : index
    %338 = vector.load %arg7[%c1_108, %c0_109, %c0_110] : memref<2x64x32xbf16, #tpu.memory_space<vmem>>, vector<1x64x32xbf16>
    %339 = vector.shape_cast %338 : vector<1x64x32xbf16> to vector<64x32xbf16>
    %340 = arith.truncf %337 : vector<16x64xf32> to vector<16x64xbf16>
    %cst_111 = arith.constant dense<0.000000e+00> : vector<16x32xf32>
    %341 = tpu.matmul %340, %339, %cst_111 {dimension_numbers = #tpu.dot_dimension_numbers<[1], [0], [0], [1], [0, 0, 1, 1], [], []>} : vector<16x64xbf16>, vector<64x32xbf16>, vector<16x32xf32> -> vector<16x32xf32>
    %342 = vector.broadcast %203 : vector<1x32xf32> to vector<16x32xf32>
    %343 = arith.addf %341, %342 : vector<16x32xf32>
    %344 = arith.addf %343, %291 : vector<16x32xf32>
    %cst_112 = arith.constant dense<0.000000e+00> : vector<16xf32>
    %345 = vector.multi_reduction <add>, %344, %cst_112 [1] : vector<16x32xf32> to vector<16xf32>
    %346 = vector.shape_cast %345 : vector<16xf32> to vector<16x1xf32>
    %cst_113 = arith.constant 3.200000e+01 : f32
    %347 = vector.broadcast %cst_113 : f32 to vector<16x1xf32>
    %348 = arith.divf %346, %347 : vector<16x1xf32>
    %349 = vector.broadcast %348 : vector<16x1xf32> to vector<16x32xf32>
    %350 = arith.subf %344, %349 : vector<16x32xf32>
    %351 = arith.mulf %350, %350 : vector<16x32xf32>
    %cst_114 = arith.constant dense<0.000000e+00> : vector<16xf32>
    %352 = vector.multi_reduction <add>, %351, %cst_114 [1] : vector<16x32xf32> to vector<16xf32>
    %353 = vector.shape_cast %352 : vector<16xf32> to vector<16x1xf32>
    %cst_115 = arith.constant 3.200000e+01 : f32
    %354 = vector.broadcast %cst_115 : f32 to vector<16x1xf32>
    %355 = arith.divf %353, %354 : vector<16x1xf32>
    %cst_116 = arith.constant 9.99999996E-13 : f32
    %356 = vector.broadcast %cst_116 : f32 to vector<16x1xf32>
    %357 = arith.addf %355, %356 : vector<16x1xf32>
    %358 = math.rsqrt %357 : vector<16x1xf32>
    %359 = vector.broadcast %358 : vector<16x1xf32> to vector<16x32xf32>
    %360 = arith.mulf %350, %359 : vector<16x32xf32>
    %361 = vector.broadcast %204 : vector<1x32xf32> to vector<16x32xf32>
    %362 = arith.mulf %360, %361 : vector<16x32xf32>
    %363 = vector.broadcast %205 : vector<1x32xf32> to vector<16x32xf32>
    %364 = arith.addf %362, %363 : vector<16x32xf32>
    %c0_117 = arith.constant 0 : index
    %c0_118 = arith.constant 0 : index
    %365 = vector.load %arg9[%c0_117, %c0_118] : memref<16x32xf32, #tpu.memory_space<vmem>>, vector<16x32xf32>
    tpu.vector_store %arg9[%c0_117, %c0_118], %364 {strides = array<i32>} : memref<16x32xf32, #tpu.memory_space<vmem>>, vector<16x32xf32>,
    return
  }
  func.func @transform_0(%arg0: i32) -> (i32, i32) {
    %c0_i32 = arith.constant 0 : i32
    %c0_i32_0 = arith.constant 0 : i32
    %c0_i32_1 = arith.constant 0 : i32
    return %c0_i32, %c0_i32_0 : i32, i32
  }
  func.func @transform_1(%arg0: i32) -> (i32, i32) {
    %c0_i32 = arith.constant 0 : i32
    %c0_i32_0 = arith.constant 0 : i32
    %c0_i32_1 = arith.constant 0 : i32
    return %c0_i32, %c0_i32_0 : i32, i32
  }
  func.func @transform_2(%arg0: i32) -> (i32, i32, i32) {
    %c0_i32 = arith.constant 0 : i32
    %c0_i32_0 = arith.constant 0 : i32
    %c0_i32_1 = arith.constant 0 : i32
    %c0_i32_2 = arith.constant 0 : i32
    return %c0_i32, %c0_i32_0, %c0_i32_1 : i32, i32, i32
  }
  func.func @transform_3(%arg0: i32) -> (i32, i32, i32) {
    %c0_i32 = arith.constant 0 : i32
    %c0_i32_0 = arith.constant 0 : i32
    %c0_i32_1 = arith.constant 0 : i32
    %c0_i32_2 = arith.constant 0 : i32
    return %c0_i32, %c0_i32_0, %c0_i32_1 : i32, i32, i32
  }
  func.func @transform_4(%arg0: i32) -> (i32, i32, i32) {
    %c0_i32 = arith.constant 0 : i32
    %c0_i32_0 = arith.constant 0 : i32
    %c0_i32_1 = arith.constant 0 : i32
    %c0_i32_2 = arith.constant 0 : i32
    return %c0_i32, %c0_i32_0, %c0_i32_1 : i32, i32, i32
  }
  func.func @transform_5(%arg0: i32) -> (i32, i32, i32) {
    %c0_i32 = arith.constant 0 : i32
    %c0_i32_0 = arith.constant 0 : i32
    %c0_i32_1 = arith.constant 0 : i32
    %c0_i32_2 = arith.constant 0 : i32
    return %c0_i32, %c0_i32_0, %c0_i32_1 : i32, i32, i32
  }
  func.func @transform_6(%arg0: i32) -> (i32, i32, i32) {
    %c0_i32 = arith.constant 0 : i32
    %c0_i32_0 = arith.constant 0 : i32
    %c0_i32_1 = arith.constant 0 : i32
    %c0_i32_2 = arith.constant 0 : i32
    return %c0_i32, %c0_i32_0, %c0_i32_1 : i32, i32, i32
  }
  func.func @transform_7(%arg0: i32) -> (i32, i32, i32) {
    %c0_i32 = arith.constant 0 : i32
    %c0_i32_0 = arith.constant 0 : i32
    %c0_i32_1 = arith.constant 0 : i32
    %c0_i32_2 = arith.constant 0 : i32
    return %c0_i32, %c0_i32_0, %c0_i32_1 : i32, i32, i32
  }
  func.func @transform_8(%arg0: i32) -> (i32, i32) {
    %c0_i32 = arith.constant 0 : i32
    %c0_i32_0 = arith.constant 0 : i32
    %c0_i32_1 = arith.constant 0 : i32
    return %c0_i32, %c0_i32_0 : i32, i32
  }
}

</mosaic_0001>

<llo_original>
// kernel: textnet_forward.1
$region0: #{textnet_forward.1}
  #allocation0 [shape = 'u32[]', space=smem, size = 0x4, offset = 0x4, fixed_abs, tag = 'smem constant byte address 0x4 - core index']
  #allocation1 [shape = 'u32[144,128]{1,0:T(1,128)}', space=vmem, size = 0x12000, scoped, tag = 'internal scratch']
  %s0 = inlined_call_operand.vmem [shape: f32[16,32], index: 0, kind: input, shape index: {}]
  %s1 = inlined_call_operand.vmem [shape: f32[2,32], index: 1, kind: input, shape index: {}]
  %s2 = inlined_call_operand.vmem [shape: f32[2,1,8], index: 2, kind: input, shape index: {}]
  %s3 = inlined_call_operand.vmem [shape: bf16[2,32,96], index: 3, kind: input, shape index: {}]
  %s4 = inlined_call_operand.vmem [shape: bf16[2,32,32], index: 4, kind: input, shape index: {}]
  %s5 = inlined_call_operand.vmem [shape: bf16[2,32,64], index: 5, kind: input, shape index: {}]
  %s6 = inlined_call_operand.vmem [shape: bf16[2,64,32], index: 6, kind: input, shape index: {}]
  %s7 = inlined_call_operand.vmem [shape: f32[2,8,96], index: 7, kind: input, shape index: {}]
  %s8 = inlined_call_operand.hbm [shape: f32[16,32], index: 8, kind: output, shape index: {}]
  %s9 = sld [smem:[#allocation0]]
  $region42: #{textnet_forward.1} parent=0
    _
  %s11 = ssub.s32 1, %s9
  %s12 = scalar_select 0, %s11, %s9
  $region1: #{textnet_forward.1} parent=0
    #allocation2 [shape = 'u8[8192]{0}', space=vmem, size = 0x2000, scoped, tag = 'output window, operand 0, single buffered']
    #allocation3 [shape = 's32[1]{0}', space=sflag, size = 0x4, scoped, tag = 'scoped memory for textnet_forward.1']
    %13 = vsyncpa [#allocation3], 0
    // Predicated region
    $region2: #{textnet_forward.1} parent=1 // pred_check
      _
    $region3: #{textnet_forward.1} parent=1 // pred_check_branch
      %15 = sbr.rel (0) target = $region5
    $region4: #{textnet_forward.1} parent=1 // pred_region
      _
    $region5: #{textnet_forward.1} parent=1 // pred_fallthru
      _
    // Predicated region
    $region6: #{textnet_forward.1} parent=1 // pred_check
      _
    $region7: #{textnet_forward.1} parent=1 // pred_check_branch
      %17 = sbr.rel (0) target = $region9
    $region8: #{textnet_forward.1} parent=1 // pred_region
      _
    $region9: #{textnet_forward.1} parent=1 // pred_fallthru
      _
    // Predicated region
    $region10: #{textnet_forward.1} parent=1 // pred_check
      _
    $region11: #{textnet_forward.1} parent=1 // pred_check_branch
      %19 = sbr.rel (0) target = $region13
    $region12: #{textnet_forward.1} parent=1 // pred_region
      _
    $region13: #{textnet_forward.1} parent=1 // pred_fallthru
      _
    // Predicated region
    $region14: #{textnet_forward.1} parent=1 // pred_check
      _
    $region15: #{textnet_forward.1} parent=1 // pred_check_branch
      %21 = sbr.rel (0) target = $region17
    $region16: #{textnet_forward.1} parent=1 // pred_region
      _
    $region17: #{textnet_forward.1} parent=1 // pred_fallthru
      _
    // Predicated region
    $region18: #{textnet_forward.1} parent=1 // pred_check
      _
    $region19: #{textnet_forward.1} parent=1 // pred_check_branch
      %23 = sbr.rel (0) target = $region21
    $region20: #{textnet_forward.1} parent=1 // pred_region
      _
    $region21: #{textnet_forward.1} parent=1 // pred_fallthru
      _
    // Predicated region
    $region22: #{textnet_forward.1} parent=1 // pred_check
      _
    $region23: #{textnet_forward.1} parent=1 // pred_check_branch
      %25 = sbr.rel (0) target = $region25
    $region24: #{textnet_forward.1} parent=1 // pred_region
      _
    $region25: #{textnet_forward.1} parent=1 // pred_fallthru
      _
    // Predicated region
    $region26: #{textnet_forward.1} parent=1 // pred_check
      _
    $region27: #{textnet_forward.1} parent=1 // pred_check_branch
      %27 = sbr.rel (0) target = $region29
    $region28: #{textnet_forward.1} parent=1 // pred_region
      _
    $region29: #{textnet_forward.1} parent=1 // pred_fallthru
      _
    // Predicated region
    $region30: #{textnet_forward.1} parent=1 // pred_check
      _
    $region31: #{textnet_forward.1} parent=1 // pred_check_branch
      %29 = sbr.rel (0) target = $region33
    $region32: #{textnet_forward.1} parent=1 // pred_region
      _
    $region33: #{textnet_forward.1} parent=1 // pred_fallthru
      _
    %v31 = vld [vmem:[%s1] sm:$0x3]
    %v32 = vld [vmem:[%s0] sm:$0xff]
    %v33 = vld [vmem:[%s0 + $0x8] sm:$0xff]
    %vm34 = vcmask 261120
    %v35 = vsel %vm34, %v32, 0.0
    %36 = vadd.xlane.f32.xlu0 %v35
    %v37 = vpop.xlane.xlu0 %36
    %v38 = vsel %vm34, %v33, 0.0
    %39 = vadd.xlane.f32.xlu0 %v38
    %v40 = vpop.xlane.xlu0 %39
    %v41 = vrcp.pop 32.0
    %v42 = vmul.f32 %v37, %v41
    %v43 = vmul.f32 %v40, %v41
    %v44 = vsub.f32 %v32, %v42
    %v45 = vsub.f32 %v33, %v43
    %v46 = vmul.f32 %v44, %v44
    %v47 = vmul.f32 %v45, %v45
    %v48 = vsel %vm34, %v46, 0.0
    %49 = vadd.xlane.f32.xlu0 %v48
    %v50 = vpop.xlane.xlu0 %49
    %v51 = vsel %vm34, %v47, 0.0
    %52 = vadd.xlane.f32.xlu0 %v51
    %v53 = vpop.xlane.xlu0 %52
    %v54 = vmul.f32 %v50, %v41
    %v55 = vmul.f32 %v53, %v41
    %v56 = vadd.f32 %v54, 1e-12
    %v57 = vadd.f32 %v55, 1e-12
    %v58 = vrsqrt.pop %v56
    %v59 = vrsqrt.pop %v57
    %v60 = vmul.f32 %v44, %v58
    %v61 = vmul.f32 %v45, %v59
    %v62 = vlaneseq
    %v63 = vshrl.u32 %v62, 7
    %v64 = vsub.s32 0, %v63
    %v65 = vrot.slane %v31, %v64
    %v66 = vmul.f32 %v60, %v65
    %v67 = vmul.f32 %v61, %v65
    %v68 = vlaneseq
    %v69 = vshrl.u32 %v68, 7
    %v70 = vsub.s32 1, %v69
    %v71 = vrot.slane %v31, %v70
    %v72 = vadd.f32 %v66, %v71
    %v73 = vadd.f32 %v67, %v71
    %v74 = vld [vmem:[%s2] sm:$0x1]
    %v75 = vld [vmem:[%s2 + $0x1] sm:$0x1]
    %v78 = vlaneseq
    %v79 = vshrl.u32 %v78, 7
    %v80 = vsub.s32 0, %v79
    %v81 = vrot.slane %v74, %v80
    %v82 = vlaneseq
    %v83 = vshrl.u32 %v82, 7
    %v84 = vsub.s32 0, %v83
    %v85 = vrot.slane %v75, %v84
    %v88 = vld [vmem:[%s7] sm:$0xff]
    %v89 = vld [vmem:[%s3] sm:$0xf]
    %v90 = vld [vmem:[%s3 + $0x4] sm:$0xf]
    %v91 = vld [vmem:[%s3 + $0x8] sm:$0xf]
    %v92 = vld [vmem:[%s3 + $0xc] sm:$0xf]
    %v93 = vpack.c.bf16 %v73, %v72
    %v94 = vlaneseq
    %v95 = vshrl.u32 %v94, 7
    %v96 = vsub.s32 0, %v95
    %v97 = vrot.slane %v88, %v96
    %v102 = vunpack.c.l.b16 %v89
    %v103 = vunpack.c.l.b16 %v90
    %v104 = vunpack.c.l.b16 %v91
    %v105 = vunpack.c.l.b16 %v92
    %v106 = vpack.c.b16 %v103, %v102
    %v107 = vpack.c.b16 %v105, %v104
    %v111 = vsel %vm34, %v93, 0
    %113 = vmatprep.subr.bf16.mxu0 0
    %114 = vmatpush1.bf16.msra.mxu0 0
    %115 = vmatprep.subr.bf16.mxu0 0
    %116 = vmatpush1.bf16.msra.mxu0 0
    %117 = vmatprep.subr.bf16.mxu0 0
    %118 = vmatpush1.bf16.msra.mxu0 0
    %119 = vmatprep.subr.bf16.mxu0 0
    %120 = vmatpush1.bf16.msra.mxu0 0
    %121 = vmatprep.subr.bf16.mxu0 0
    %122 = vmatpush1.bf16.msra.mxu0 0
    %123 = vmatprep.subr.bf16.mxu0 0
    %124 = vmatpush1.bf16.msra.mxu0 0
    %125 = vmatprep.subr.bf16.mxu0 0
    %126 = vmatpush1.bf16.msra.mxu0 %v107
    %127 = vmatprep.subr.bf16.mxu0 0
    %128 = vmatpush1.bf16.msra.mxu0 %v106
    %129 = vmatprep.subr.bf16.mxu0 0
    %130 = vmatpush2.bf16.msra.mxu0 0
    %131 = vmatprep.subr.bf16.mxu0 0
    %132 = vmatpush2.bf16.msra.mxu0 0
    %133 = vmatprep.subr.bf16.mxu0 0
    %134 = vmatpush2.bf16.msra.mxu0 0
    %135 = vmatprep.subr.bf16.mxu0 0
    %136 = vmatpush2.bf16.msra.mxu0 0
    %137 = vmatprep.subr.bf16.mxu0 0
    %138 = vmatpush2.bf16.msra.mxu0 0
    %139 = vmatprep.subr.bf16.mxu0 0
    %140 = vmatpush2.bf16.msra.mxu0 0
    %141 = vmatprep.subr.bf16.mxu0 0
    %142 = vmatpush2.bf16.msra.mxu0 0
    %143 = vmatprep.subr.bf16.mxu0 0
    %144 = vmatpush2.bf16.msra.mxu0 0
    %145 = vmatprep.mubr.bf16.mxu0 0
    %146 = vmatmul.mubr.bf16.gmra.mxu0 %v111
    %v147 = vpop.f32.mrf.mxu0
    %v148 = vadd.f32 %v97, %v147
    %v149 = vpop.f32.mrf.mxu0
    %v150 = vpop.f32.mrf.mxu0
    %v151 = vadd.f32 %v97, %v150
    %v152 = vpop.f32.mrf.mxu0
    %153 = vdwg.mxu0
    %v154 = vld [vmem:[%s4] sm:$0xf]
    %v155 = vld [vmem:[%s4 + $0x4] sm:$0xf]
    %v156 = vld [vmem:[%s4 + $0x8] sm:$0xf]
    %v157 = vld [vmem:[%s4 + $0xc] sm:$0xf]
    %v158 = vpack.c.bf16 %v148, %v148
    %v159 = vpack.c.bf16 %v151, %v151
    %161 = vrot.lane.b32.xlu0 %v158, 96
    %v162 = vpop.permute.xlu0 %161
    %vm163 = vcmask 130048
    %v165 = vsel %vm163, %v158, 0
    %v168 = vsel %vm163, %v162, 0
    %170 = vmatprep.subr.bf16.mxu0 0
    %171 = vmatpush1.bf16.xpose.msra.mxu0 0
    %172 = vmatprep.subr.bf16.mxu0 0
    %173 = vmatpush1.bf16.xpose.msra.mxu0 0
    %174 = vmatprep.subr.bf16.mxu0 0
    %175 = vmatpush1.bf16.xpose.msra.mxu0 0
    %176 = vmatprep.subr.bf16.mxu0 0
    %177 = vmatpush1.bf16.xpose.msra.mxu0 0
    %178 = vmatprep.subr.bf16.mxu0 0
    %179 = vmatpush1.bf16.xpose.msra.mxu0 0
    %180 = vmatprep.subr.bf16.mxu0 0
    %181 = vmatpush1.bf16.xpose.msra.mxu0 0
    %182 = vmatprep.subr.bf16.mxu0 0
    %183 = vmatpush1.bf16.xpose.msra.mxu0 0
    %184 = vmatprep.subr.bf16.mxu0 0
    %185 = vmatpush1.bf16.xpose.msra.mxu0 %v168
    %186 = vmatprep.subr.bf16.mxu0 0
    %187 = vmatpush2.bf16.xpose.msra.mxu0 0
    %188 = vmatprep.subr.bf16.mxu0 0
    %189 = vmatpush2.bf16.xpose.msra.mxu0 0
    %190 = vmatprep.subr.bf16.mxu0 0
    %191 = vmatpush2.bf16.xpose.msra.mxu0 0
    %192 = vmatprep.subr.bf16.mxu0 0
    %193 = vmatpush2.bf16.xpose.msra.mxu0 0
    %194 = vmatprep.subr.bf16.mxu0 0
    %195 = vmatpush2.bf16.xpose.msra.mxu0 0
    %196 = vmatprep.subr.bf16.mxu0 0
    %197 = vmatpush2.bf16.xpose.msra.mxu0 0
    %198 = vmatprep.subr.bf16.mxu0 0
    %199 = vmatpush2.bf16.xpose.msra.mxu0 0
    %200 = vmatprep.subr.bf16.mxu0 0
    %201 = vmatpush2.bf16.xpose.msra.mxu0 0
    %202 = vmatprep.mubr.bf16.mxu0 0
    %203 = vmatmul.mubr.bf16.gmra.mxu0 %v165
    %v204 = vpop.f32.mrf.mxu0
    %v205 = vadd.f32 %v81, %v204
    %v206 = vpop.f32.mrf.mxu0
    %v207 = vpop.f32.mrf.mxu0
    %v208 = vpop.f32.mrf.mxu0
    %209 = vdwg.mxu0
    %211 = vrot.lane.b32.xlu0 %v159, 96
    %v212 = vpop.permute.xlu0 %211
    %v214 = vsel %vm163, %v159, 0
    %v217 = vsel %vm163, %v212, 0
    %219 = vmatprep.subr.bf16.mxu0 0
    %220 = vmatpush1.bf16.xpose.msra.mxu0 0
    %221 = vmatprep.subr.bf16.mxu0 0
    %222 = vmatpush1.bf16.xpose.msra.mxu0 0
    %223 = vmatprep.subr.bf16.mxu0 0
    %224 = vmatpush1.bf16.xpose.msra.mxu0 0
    %225 = vmatprep.subr.bf16.mxu0 0
    %226 = vmatpush1.bf16.xpose.msra.mxu0 0
    %227 = vmatprep.subr.bf16.mxu0 0
    %228 = vmatpush1.bf16.xpose.msra.mxu0 0
    %229 = vmatprep.subr.bf16.mxu0 0
    %230 = vmatpush1.bf16.xpose.msra.mxu0 0
    %231 = vmatprep.subr.bf16.mxu0 0
    %232 = vmatpush1.bf16.xpose.msra.mxu0 0
    %233 = vmatprep.subr.bf16.mxu0 0
    %234 = vmatpush1.bf16.xpose.msra.mxu0 %v217
    %235 = vmatprep.subr.bf16.mxu0 0
    %236 = vmatpush2.bf16.xpose.msra.mxu0 0
    %237 = vmatprep.subr.bf16.mxu0 0
    %238 = vmatpush2.bf16.xpose.msra.mxu0 0
    %239 = vmatprep.subr.bf16.mxu0 0
    %240 = vmatpush2.bf16.xpose.msra.mxu0 0
    %241 = vmatprep.subr.bf16.mxu0 0
    %242 = vmatpush2.bf16.xpose.msra.mxu0 0
    %243 = vmatprep.subr.bf16.mxu0 0
    %244 = vmatpush2.bf16.xpose.msra.mxu0 0
    %245 = vmatprep.subr.bf16.mxu0 0
    %246 = vmatpush2.bf16.xpose.msra.mxu0 0
    %247 = vmatprep.subr.bf16.mxu0 0
    %248 = vmatpush2.bf16.xpose.msra.mxu0 0
    %249 = vmatprep.subr.bf16.mxu0 0
    %250 = vmatpush2.bf16.xpose.msra.mxu0 0
    %251 = vmatprep.mubr.bf16.mxu0 0
    %252 = vmatmul.mubr.bf16.gmra.mxu0 %v214
    %v253 = vpop.f32.mrf.mxu0
    %v254 = vadd.f32 %v85, %v253
    %v255 = vpop.f32.mrf.mxu0
    %v256 = vpop.f32.mrf.mxu0
    %v257 = vpop.f32.mrf.mxu0
    %258 = vdwg.mxu0
    %vm259 = vcmask 64512
    %v260 = vsel %vm259, %v205, -inf
    %261 = vmax.xlane.f32.xlu0 %v260
    %v262 = vpop.xlane.xlu0 %261
    %v263 = vsel %vm259, %v254, -inf
    %264 = vmax.xlane.f32.xlu0 %v263
    %v265 = vpop.xlane.xlu0 %264
    %v266 = vsub.f32 %v205, %v262
    %v267 = vsub.f32 %v254, %v265
    %v268 = vmul.f32 %v266, 1.442695
    %v269 = vpow.pop %v268
    %v270 = vmul.f32 %v267, 1.442695
    %v271 = vpow.pop %v270
    %v272 = vsel %vm259, %v269, 0.0
    %273 = vadd.xlane.f32.xlu0 %v272
    %v274 = vpop.xlane.xlu0 %273
    %v275 = vsel %vm259, %v271, 0.0
    %276 = vadd.xlane.f32.xlu0 %v275
    %v277 = vpop.xlane.xlu0 %276
    %v278 = vrcp.pop %v274
    %v279 = vmul.f32 %v269, %v278
    %v280 = vrcp.pop %v277
    %v281 = vmul.f32 %v271, %v280
    %v282 = vpack.c.bf16 %v279, %v279
    %v283 = vpack.c.bf16 %v281, %v281
    %284 = vrot.lane.b32.xlu0 %v158, 64
    %v285 = vpop.permute.xlu0 %284
    %v287 = vsel %vm259, %v282, 0
    %vm289 = vcmask 1043456
    %v291 = vsel %vm289, %v285, 0
    %293 = vmatprep.subr.bf16.mxu0 0
    %294 = vmatpush1.bf16.msra.mxu0 0
    %295 = vmatprep.subr.bf16.mxu0 0
    %296 = vmatpush1.bf16.msra.mxu0 0
    %297 = vmatprep.subr.bf16.mxu0 0
    %298 = vmatpush1.bf16.msra.mxu0 0
    %299 = vmatprep.subr.bf16.mxu0 0
    %300 = vmatpush1.bf16.msra.mxu0 0
    %301 = vmatprep.subr.bf16.mxu0 0
    %302 = vmatpush1.bf16.msra.mxu0 0
    %303 = vmatprep.subr.bf16.mxu0 0
    %304 = vmatpush1.bf16.msra.mxu0 0
    %305 = vmatprep.subr.bf16.mxu0 0
    %306 = vmatpush1.bf16.msra.mxu0 0
    %307 = vmatprep.subr.bf16.mxu0 0
    %308 = vmatpush1.bf16.msra.mxu0 %v291
    %309 = vmatprep.subr.bf16.mxu0 0
    %310 = vmatpush2.bf16.msra.mxu0 0
    %311 = vmatprep.subr.bf16.mxu0 0
    %312 = vmatpush2.bf16.msra.mxu0 0
    %313 = vmatprep.subr.bf16.mxu0 0
    %314 = vmatpush2.bf16.msra.mxu0 0
    %315 = vmatprep.subr.bf16.mxu0 0
    %316 = vmatpush2.bf16.msra.mxu0 0
    %317 = vmatprep.subr.bf16.mxu0 0
    %318 = vmatpush2.bf16.msra.mxu0 0
    %319 = vmatprep.subr.bf16.mxu0 0
    %320 = vmatpush2.bf16.msra.mxu0 0
    %321 = vmatprep.subr.bf16.mxu0 0
    %322 = vmatpush2.bf16.msra.mxu0 0
    %323 = vmatprep.subr.bf16.mxu0 0
    %324 = vmatpush2.bf16.msra.mxu0 0
    %325 = vmatprep.mubr.bf16.mxu0 0
    %326 = vmatmul.mubr.bf16.gmra.mxu0 %v287
    %v327 = vpop.f32.mrf.mxu0
    %v328 = vadd.f32 0.0, %v327
    %v329 = vpop.f32.mrf.mxu0
    %v330 = vpop.f32.mrf.mxu0
    %v331 = vpop.f32.mrf.mxu0
    %332 = vdwg.mxu0
    %333 = vrot.lane.b32.xlu0 %v159, 64
    %v334 = vpop.permute.xlu0 %333
    %v336 = vsel %vm259, %v283, 0
    %v339 = vsel %vm289, %v334, 0
    %341 = vmatprep.subr.bf16.mxu0 0
    %342 = vmatpush1.bf16.msra.mxu0 0
    %343 = vmatprep.subr.bf16.mxu0 0
    %344 = vmatpush1.bf16.msra.mxu0 0
    %345 = vmatprep.subr.bf16.mxu0 0
    %346 = vmatpush1.bf16.msra.mxu0 0
    %347 = vmatprep.subr.bf16.mxu0 0
    %348 = vmatpush1.bf16.msra.mxu0 0
    %349 = vmatprep.subr.bf16.mxu0 0
    %350 = vmatpush1.bf16.msra.mxu0 0
    %351 = vmatprep.subr.bf16.mxu0 0
    %352 = vmatpush1.bf16.msra.mxu0 0
    %353 = vmatprep.subr.bf16.mxu0 0
    %354 = vmatpush1.bf16.msra.mxu0 0
    %355 = vmatprep.subr.bf16.mxu0 0
    %356 = vmatpush1.bf16.msra.mxu0 %v339
    %357 = vmatprep.subr.bf16.mxu0 0
    %358 = vmatpush2.bf16.msra.mxu0 0
    %359 = vmatprep.subr.bf16.mxu0 0
    %360 = vmatpush2.bf16.msra.mxu0 0
    %361 = vmatprep.subr.bf16.mxu0 0
    %362 = vmatpush2.bf16.msra.mxu0 0
    %363 = vmatprep.subr.bf16.mxu0 0
    %364 = vmatpush2.bf16.msra.mxu0 0
    %365 = vmatprep.subr.bf16.mxu0 0
    %366 = vmatpush2.bf16.msra.mxu0 0
    %367 = vmatprep.subr.bf16.mxu0 0
    %368 = vmatpush2.bf16.msra.mxu0 0
    %369 = vmatprep.subr.bf16.mxu0 0
    %370 = vmatpush2.bf16.msra.mxu0 0
    %371 = vmatprep.subr.bf16.mxu0 0
    %372 = vmatpush2.bf16.msra.mxu0 0
    %373 = vmatprep.mubr.bf16.mxu0 0
    %374 = vmatmul.mubr.bf16.gmra.mxu0 %v336
    %v375 = vpop.f32.mrf.mxu0
    %v376 = vadd.f32 0.0, %v375
    %v377 = vpop.f32.mrf.mxu0
    %v378 = vpop.f32.mrf.mxu0
    %v379 = vpop.f32.mrf.mxu0
    %380 = vdwg.mxu0
    %v381 = vpack.c.bf16 %v376, %v328
    %382 = vrot.lane.b32.xlu0 %v158, 112
    %v383 = vpop.permute.xlu0 %382
    %384 = vrot.lane.b32.xlu0 %v158, 80
    %v385 = vpop.permute.xlu0 %384
    %v387 = vsel %vm163, %v383, 0
    %v390 = vsel %vm163, %v385, 0
    %392 = vmatprep.subr.bf16.mxu0 0
    %393 = vmatpush1.bf16.xpose.msra.mxu0 0
    %394 = vmatprep.subr.bf16.mxu0 0
    %395 = vmatpush1.bf16.xpose.msra.mxu0 0
    %396 = vmatprep.subr.bf16.mxu0 0
    %397 = vmatpush1.bf16.xpose.msra.mxu0 0
    %398 = vmatprep.subr.bf16.mxu0 0
    %399 = vmatpush1.bf16.xpose.msra.mxu0 0
    %400 = vmatprep.subr.bf16.mxu0 0
    %401 = vmatpush1.bf16.xpose.msra.mxu0 0
    %402 = vmatprep.subr.bf16.mxu0 0
    %403 = vmatpush1.bf16.xpose.msra.mxu0 0
    %404 = vmatprep.subr.bf16.mxu0 0
    %405 = vmatpush1.bf16.xpose.msra.mxu0 0
    %406 = vmatprep.subr.bf16.mxu0 0
    %407 = vmatpush1.bf16.xpose.msra.mxu0 %v390
    %408 = vmatprep.subr.bf16.mxu0 0
    %409 = vmatpush2.bf16.xpose.msra.mxu0 0
    %410 = vmatprep.subr.bf16.mxu0 0
    %411 = vmatpush2.bf16.xpose.msra.mxu0 0
    %412 = vmatprep.subr.bf16.mxu0 0
    %413 = vmatpush2.bf16.xpose.msra.mxu0 0
    %414 = vmatprep.subr.bf16.mxu0 0
    %415 = vmatpush2.bf16.xpose.msra.mxu0 0
    %416 = vmatprep.subr.bf16.mxu0 0
    %417 = vmatpush2.bf16.xpose.msra.mxu0 0
    %418 = vmatprep.subr.bf16.mxu0 0
    %419 = vmatpush2.bf16.xpose.msra.mxu0 0
    %420 = vmatprep.subr.bf16.mxu0 0
    %421 = vmatpush2.bf16.xpose.msra.mxu0 0
    %422 = vmatprep.subr.bf16.mxu0 0
    %423 = vmatpush2.bf16.xpose.msra.mxu0 0
    %424 = vmatprep.mubr.bf16.mxu0 0
    %425 = vmatmul.mubr.bf16.gmra.mxu0 %v387
    %v426 = vpop.f32.mrf.mxu0
    %v427 = vadd.f32 %v81, %v426
    %v428 = vpop.f32.mrf.mxu0
    %v429 = vpop.f32.mrf.mxu0
    %v430 = vpop.f32.mrf.mxu0
    %431 = vdwg.mxu0
    %432 = vrot.lane.b32.xlu0 %v159, 112
    %v433 = vpop.permute.xlu0 %432
    %434 = vrot.lane.b32.xlu0 %v159, 80
    %v435 = vpop.permute.xlu0 %434
    %v437 = vsel %vm163, %v433, 0
    %v440 = vsel %vm163, %v435, 0
    %442 = vmatprep.subr.bf16.mxu0 0
    %443 = vmatpush1.bf16.xpose.msra.mxu0 0
    %444 = vmatprep.subr.bf16.mxu0 0
    %445 = vmatpush1.bf16.xpose.msra.mxu0 0
    %446 = vmatprep.subr.bf16.mxu0 0
    %447 = vmatpush1.bf16.xpose.msra.mxu0 0
    %448 = vmatprep.subr.bf16.mxu0 0
    %449 = vmatpush1.bf16.xpose.msra.mxu0 0
    %450 = vmatprep.subr.bf16.mxu0 0
    %451 = vmatpush1.bf16.xpose.msra.mxu0 0
    %452 = vmatprep.subr.bf16.mxu0 0
    %453 = vmatpush1.bf16.xpose.msra.mxu0 0
    %454 = vmatprep.subr.bf16.mxu0 0
    %455 = vmatpush1.bf16.xpose.msra.mxu0 0
    %456 = vmatprep.subr.bf16.mxu0 0
    %457 = vmatpush1.bf16.xpose.msra.mxu0 %v440
    %458 = vmatprep.subr.bf16.mxu0 0
    %459 = vmatpush2.bf16.xpose.msra.mxu0 0
    %460 = vmatprep.subr.bf16.mxu0 0
    %461 = vmatpush2.bf16.xpose.msra.mxu0 0
    %462 = vmatprep.subr.bf16.mxu0 0
    %463 = vmatpush2.bf16.xpose.msra.mxu0 0
    %464 = vmatprep.subr.bf16.mxu0 0
    %465 = vmatpush2.bf16.xpose.msra.mxu0 0
    %466 = vmatprep.subr.bf16.mxu0 0
    %467 = vmatpush2.bf16.xpose.msra.mxu0 0
    %468 = vmatprep.subr.bf16.mxu0 0
    %469 = vmatpush2.bf16.xpose.msra.mxu0 0
    %470 = vmatprep.subr.bf16.mxu0 0
    %471 = vmatpush2.bf16.xpose.msra.mxu0 0
    %472 = vmatprep.subr.bf16.mxu0 0
    %473 = vmatpush2.bf16.xpose.msra.mxu0 0
    %474 = vmatprep.mubr.bf16.mxu0 0
    %475 = vmatmul.mubr.bf16.gmra.mxu0 %v437
    %v476 = vpop.f32.mrf.mxu0
    %v477 = vadd.f32 %v85, %v476
    %v478 = vpop.f32.mrf.mxu0
    %v479 = vpop.f32.mrf.mxu0
    %v480 = vpop.f32.mrf.mxu0
    %481 = vdwg.mxu0
    %v482 = vsel %vm259, %v427, -inf
    %483 = vmax.xlane.f32.xlu0 %v482
    %v484 = vpop.xlane.xlu0 %483
    %v485 = vsel %vm259, %v477, -inf
    %486 = vmax.xlane.f32.xlu0 %v485
    %v487 = vpop.xlane.xlu0 %486
    %v488 = vsub.f32 %v427, %v484
    %v489 = vsub.f32 %v477, %v487
    %v490 = vmul.f32 %v488, 1.442695
    %v491 = vpow.pop %v490
    %v492 = vmul.f32 %v489, 1.442695
    %v493 = vpow.pop %v492
    %v494 = vsel %vm259, %v491, 0.0
    %495 = vadd.xlane.f32.xlu0 %v494
    %v496 = vpop.xlane.xlu0 %495
    %v497 = vsel %vm259, %v493, 0.0
    %498 = vadd.xlane.f32.xlu0 %v497
    %v499 = vpop.xlane.xlu0 %498
    %v500 = vrcp.pop %v496
    %v501 = vmul.f32 %v491, %v500
    %v502 = vrcp.pop %v499
    %v503 = vmul.f32 %v493, %v502
    %v504 = vpack.c.bf16 %v501, %v501
    %v505 = vpack.c.bf16 %v503, %v503
    %506 = vrot.lane.b32.xlu0 %v158, 48
    %v507 = vpop.permute.xlu0 %506
    %v509 = vsel %vm259, %v504, 0
    %v512 = vsel %vm289, %v507, 0
    %514 = vmatprep.subr.bf16.mxu0 0
    %515 = vmatpush1.bf16.msra.mxu0 0
    %516 = vmatprep.subr.bf16.mxu0 0
    %517 = vmatpush1.bf16.msra.mxu0 0
    %518 = vmatprep.subr.bf16.mxu0 0
    %519 = vmatpush1.bf16.msra.mxu0 0
    %520 = vmatprep.subr.bf16.mxu0 0
    %521 = vmatpush1.bf16.msra.mxu0 0
    %522 = vmatprep.subr.bf16.mxu0 0
    %523 = vmatpush1.bf16.msra.mxu0 0
    %524 = vmatprep.subr.bf16.mxu0 0
    %525 = vmatpush1.bf16.msra.mxu0 0
    %526 = vmatprep.subr.bf16.mxu0 0
    %527 = vmatpush1.bf16.msra.mxu0 0
    %528 = vmatprep.subr.bf16.mxu0 0
    %529 = vmatpush1.bf16.msra.mxu0 %v512
    %530 = vmatprep.subr.bf16.mxu0 0
    %531 = vmatpush2.bf16.msra.mxu0 0
    %532 = vmatprep.subr.bf16.mxu0 0
    %533 = vmatpush2.bf16.msra.mxu0 0
    %534 = vmatprep.subr.bf16.mxu0 0
    %535 = vmatpush2.bf16.msra.mxu0 0
    %536 = vmatprep.subr.bf16.mxu0 0
    %537 = vmatpush2.bf16.msra.mxu0 0
    %538 = vmatprep.subr.bf16.mxu0 0
    %539 = vmatpush2.bf16.msra.mxu0 0
    %540 = vmatprep.subr.bf16.mxu0 0
    %541 = vmatpush2.bf16.msra.mxu0 0
    %542 = vmatprep.subr.bf16.mxu0 0
    %543 = vmatpush2.bf16.msra.mxu0 0
    %544 = vmatprep.subr.bf16.mxu0 0
    %545 = vmatpush2.bf16.msra.mxu0 0
    %546 = vmatprep.mubr.bf16.mxu0 0
    %547 = vmatmul.mubr.bf16.gmra.mxu0 %v509
    %v548 = vpop.f32.mrf.mxu0
    %v549 = vadd.f32 0.0, %v548
    %v550 = vpop.f32.mrf.mxu0
    %v551 = vpop.f32.mrf.mxu0
    %v552 = vpop.f32.mrf.mxu0
    %553 = vdwg.mxu0
    %554 = vrot.lane.b32.xlu0 %v159, 48
    %v555 = vpop.permute.xlu0 %554
    %v557 = vsel %vm259, %v505, 0
    %v560 = vsel %vm289, %v555, 0
    %562 = vmatprep.subr.bf16.mxu0 0
    %563 = vmatpush1.bf16.msra.mxu0 0
    %564 = vmatprep.subr.bf16.mxu0 0
    %565 = vmatpush1.bf16.msra.mxu0 0
    %566 = vmatprep.subr.bf16.mxu0 0
    %567 = vmatpush1.bf16.msra.mxu0 0
    %568 = vmatprep.subr.bf16.mxu0 0
    %569 = vmatpush1.bf16.msra.mxu0 0
    %570 = vmatprep.subr.bf16.mxu0 0
    %571 = vmatpush1.bf16.msra.mxu0 0
    %572 = vmatprep.subr.bf16.mxu0 0
    %573 = vmatpush1.bf16.msra.mxu0 0
    %574 = vmatprep.subr.bf16.mxu0 0
    %575 = vmatpush1.bf16.msra.mxu0 0
    %576 = vmatprep.subr.bf16.mxu0 0
    %577 = vmatpush1.bf16.msra.mxu0 %v560
    %578 = vmatprep.subr.bf16.mxu0 0
    %579 = vmatpush2.bf16.msra.mxu0 0
    %580 = vmatprep.subr.bf16.mxu0 0
    %581 = vmatpush2.bf16.msra.mxu0 0
    %582 = vmatprep.subr.bf16.mxu0 0
    %583 = vmatpush2.bf16.msra.mxu0 0
    %584 = vmatprep.subr.bf16.mxu0 0
    %585 = vmatpush2.bf16.msra.mxu0 0
    %586 = vmatprep.subr.bf16.mxu0 0
    %587 = vmatpush2.bf16.msra.mxu0 0
    %588 = vmatprep.subr.bf16.mxu0 0
    %589 = vmatpush2.bf16.msra.mxu0 0
    %590 = vmatprep.subr.bf16.mxu0 0
    %591 = vmatpush2.bf16.msra.mxu0 0
    %592 = vmatprep.subr.bf16.mxu0 0
    %593 = vmatpush2.bf16.msra.mxu0 0
    %594 = vmatprep.mubr.bf16.mxu0 0
    %595 = vmatmul.mubr.bf16.gmra.mxu0 %v557
    %v596 = vpop.f32.mrf.mxu0
    %v597 = vadd.f32 0.0, %v596
    %v598 = vpop.f32.mrf.mxu0
    %v599 = vpop.f32.mrf.mxu0
    %v600 = vpop.f32.mrf.mxu0
    %601 = vdwg.mxu0
    %v602 = vpack.c.bf16 %v597, %v549
    %v605 = vunpack.c.l.b16 %v156
    %v606 = vunpack.c.l.b16 %v157
    %v607 = vpack.c.b16 %v606, %v605
    %v610 = vsel %vm163, %v602, 0
    %612 = vmatprep.subr.bf16.mxu0 0
    %613 = vmatpush1.bf16.msra.mxu0 0
    %614 = vmatprep.subr.bf16.mxu0 0
    %615 = vmatpush1.bf16.msra.mxu0 0
    %616 = vmatprep.subr.bf16.mxu0 0
    %617 = vmatpush1.bf16.msra.mxu0 0
    %618 = vmatprep.subr.bf16.mxu0 0
    %619 = vmatpush1.bf16.msra.mxu0 0
    %620 = vmatprep.subr.bf16.mxu0 0
    %621 = vmatpush1.bf16.msra.mxu0 0
    %622 = vmatprep.subr.bf16.mxu0 0
    %623 = vmatpush1.bf16.msra.mxu0 0
    %624 = vmatprep.subr.bf16.mxu0 0
    %625 = vmatpush1.bf16.msra.mxu0 0
    %626 = vmatprep.subr.bf16.mxu0 0
    %627 = vmatpush1.bf16.msra.mxu0 %v607
    %628 = vmatprep.subr.bf16.mxu0 0
    %629 = vmatpush2.bf16.msra.mxu0 0
    %630 = vmatprep.subr.bf16.mxu0 0
    %631 = vmatpush2.bf16.msra.mxu0 0
    %632 = vmatprep.subr.bf16.mxu0 0
    %633 = vmatpush2.bf16.msra.mxu0 0
    %634 = vmatprep.subr.bf16.mxu0 0
    %635 = vmatpush2.bf16.msra.mxu0 0
    %636 = vmatprep.subr.bf16.mxu0 0
    %637 = vmatpush2.bf16.msra.mxu0 0
    %638 = vmatprep.subr.bf16.mxu0 0
    %639 = vmatpush2.bf16.msra.mxu0 0
    %640 = vmatprep.subr.bf16.mxu0 0
    %641 = vmatpush2.bf16.msra.mxu0 0
    %642 = vmatprep.subr.bf16.mxu0 0
    %643 = vmatpush2.bf16.msra.mxu0 0
    %644 = vmatprep.mubr.bf16.mxu0 0
    %645 = vmatmul.mubr.bf16.gmra.mxu0 %v610
    %v646 = vpop.f32.mrf.mxu0
    %v647 = vadd.f32 0.0, %v646
    %v648 = vpop.f32.mrf.mxu0
    %v649 = vpop.f32.mrf.mxu0
    %v650 = vadd.f32 0.0, %v649
    %v651 = vpop.f32.mrf.mxu0
    %652 = vdwg.mxu0
    %v655 = vunpack.c.l.b16 %v154
    %v656 = vunpack.c.l.b16 %v155
    %v657 = vpack.c.b16 %v656, %v655
    %v660 = vsel %vm163, %v381, 0
    %662 = vmatprep.subr.bf16.mxu0 0
    %663 = vmatpush1.bf16.msra.mxu0 0
    %664 = vmatprep.subr.bf16.mxu0 0
    %665 = vmatpush1.bf16.msra.mxu0 0
    %666 = vmatprep.subr.bf16.mxu0 0
    %667 = vmatpush1.bf16.msra.mxu0 0
    %668 = vmatprep.subr.bf16.mxu0 0
    %669 = vmatpush1.bf16.msra.mxu0 0
    %670 = vmatprep.subr.bf16.mxu0 0
    %671 = vmatpush1.bf16.msra.mxu0 0
    %672 = vmatprep.subr.bf16.mxu0 0
    %673 = vmatpush1.bf16.msra.mxu0 0
    %674 = vmatprep.subr.bf16.mxu0 0
    %675 = vmatpush1.bf16.msra.mxu0 0
    %676 = vmatprep.subr.bf16.mxu0 0
    %677 = vmatpush1.bf16.msra.mxu0 %v657
    %678 = vmatprep.subr.bf16.mxu0 0
    %679 = vmatpush2.bf16.msra.mxu0 0
    %680 = vmatprep.subr.bf16.mxu0 0
    %681 = vmatpush2.bf16.msra.mxu0 0
    %682 = vmatprep.subr.bf16.mxu0 0
    %683 = vmatpush2.bf16.msra.mxu0 0
    %684 = vmatprep.subr.bf16.mxu0 0
    %685 = vmatpush2.bf16.msra.mxu0 0
    %686 = vmatprep.subr.bf16.mxu0 0
    %687 = vmatpush2.bf16.msra.mxu0 0
    %688 = vmatprep.subr.bf16.mxu0 0
    %689 = vmatpush2.bf16.msra.mxu0 0
    %690 = vmatprep.subr.bf16.mxu0 0
    %691 = vmatpush2.bf16.msra.mxu0 0
    %692 = vmatprep.subr.bf16.mxu0 0
    %693 = vmatpush2.bf16.msra.mxu0 0
    %694 = vmatprep.mubr.bf16.mxu0 0
    %695 = vmatmul.mubr.bf16.gmra.mxu0 %v660
    %v696 = vpop.f32.mrf.mxu0
    %v697 = vadd.f32 %v647, %v696
    %v698 = vpop.f32.mrf.mxu0
    %v699 = vpop.f32.mrf.mxu0
    %v700 = vadd.f32 %v650, %v699
    %v701 = vpop.f32.mrf.mxu0
    %702 = vdwg.mxu0
    %v703 = vlaneseq
    %v704 = vshrl.u32 %v703, 7
    %v705 = vsub.s32 1, %v704
    %v706 = vrot.slane %v88, %v705
    %v707 = vadd.f32 %v697, %v706
    %v708 = vadd.f32 %v700, %v706
    %v709 = vadd.f32 %v707, %v72
    %v710 = vadd.f32 %v708, %v73
    %v711 = vsel %vm34, %v709, 0.0
    %712 = vadd.xlane.f32.xlu0 %v711
    %v713 = vpop.xlane.xlu0 %712
    %v714 = vsel %vm34, %v710, 0.0
    %715 = vadd.xlane.f32.xlu0 %v714
    %v716 = vpop.xlane.xlu0 %715
    %v717 = vmul.f32 %v713, %v41
    %v718 = vmul.f32 %v716, %v41
    %v719 = vsub.f32 %v709, %v717
    %v720 = vsub.f32 %v710, %v718
    %v721 = vmul.f32 %v719, %v719
    %v722 = vmul.f32 %v720, %v720
    %v723 = vsel %vm34, %v721, 0.0
    %724 = vadd.xlane.f32.xlu0 %v723
    %v725 = vpop.xlane.xlu0 %724
    %v726 = vsel %vm34, %v722, 0.0
    %727 = vadd.xlane.f32.xlu0 %v726
    %v728 = vpop.xlane.xlu0 %727
    %v729 = vmul.f32 %v725, %v41
    %v730 = vmul.f32 %v728, %v41
    %v731 = vadd.f32 %v729, 1e-12
    %v732 = vadd.f32 %v730, 1e-12
    %v733 = vrsqrt.pop %v731
    %v734 = vrsqrt.pop %v732
    %v735 = vmul.f32 %v719, %v733
    %v736 = vmul.f32 %v720, %v734
    %v737 = vlaneseq
    %v738 = vshrl.u32 %v737, 7
    %v739 = vsub.s32 2, %v738
    %v740 = vrot.slane %v88, %v739
    %v741 = vmul.f32 %v735, %v740
    %v742 = vmul.f32 %v736, %v740
    %v743 = vlaneseq
    %v744 = vshrl.u32 %v743, 7
    %v745 = vsub.s32 3, %v744
    %v746 = vrot.slane %v88, %v745
    %v747 = vadd.f32 %v741, %v746
    %v748 = vadd.f32 %v742, %v746
    %v749 = vld [vmem:[%s5] sm:$0xf]
    %v750 = vld [vmem:[%s5 + $0x4] sm:$0xf]
    %v751 = vld [vmem:[%s5 + $0x8] sm:$0xf]
    %v752 = vld [vmem:[%s5 + $0xc] sm:$0xf]
    %v753 = vpack.c.bf16 %v748, %v747
    %v754 = vlaneseq
    %v755 = vshrl.u32 %v754, 7
    %v756 = vsub.s32 4, %v755
    %v757 = vrot.slane %v88, %v756
    %v762 = vunpack.c.l.b16 %v749
    %v763 = vunpack.c.l.b16 %v750
    %v764 = vunpack.c.l.b16 %v751
    %v765 = vunpack.c.l.b16 %v752
    %v766 = vpack.c.b16 %v763, %v762
    %v767 = vpack.c.b16 %v765, %v764
    %v771 = vsel %vm34, %v753, 0
    %773 = vmatprep.subr.bf16.mxu0 0
    %774 = vmatpush1.bf16.msra.mxu0 0
    %775 = vmatprep.subr.bf16.mxu0 0
    %776 = vmatpush1.bf16.msra.mxu0 0
    %777 = vmatprep.subr.bf16.mxu0 0
    %778 = vmatpush1.bf16.msra.mxu0 0
    %779 = vmatprep.subr.bf16.mxu0 0
    %780 = vmatpush1.bf16.msra.mxu0 0
    %781 = vmatprep.subr.bf16.mxu0 0
    %782 = vmatpush1.bf16.msra.mxu0 0
    %783 = vmatprep.subr.bf16.mxu0 0
    %784 = vmatpush1.bf16.msra.mxu0 0
    %785 = vmatprep.subr.bf16.mxu0 0
    %786 = vmatpush1.bf16.msra.mxu0 %v767
    %787 = vmatprep.subr.bf16.mxu0 0
    %788 = vmatpush1.bf16.msra.mxu0 %v766
    %789 = vmatprep.subr.bf16.mxu0 0
    %790 = vmatpush2.bf16.msra.mxu0 0
    %791 = vmatprep.subr.bf16.mxu0 0
    %792 = vmatpush2.bf16.msra.mxu0 0
    %793 = vmatprep.subr.bf16.mxu0 0
    %794 = vmatpush2.bf16.msra.mxu0 0
    %795 = vmatprep.subr.bf16.mxu0 0
    %796 = vmatpush2.bf16.msra.mxu0 0
    %797 = vmatprep.subr.bf16.mxu0 0
    %798 = vmatpush2.bf16.msra.mxu0 0
    %799 = vmatprep.subr.bf16.mxu0 0
    %800 = vmatpush2.bf16.msra.mxu0 0
    %801 = vmatprep.subr.bf16.mxu0 0
    %802 = vmatpush2.bf16.msra.mxu0 0
    %803 = vmatprep.subr.bf16.mxu0 0
    %804 = vmatpush2.bf16.msra.mxu0 0
    %805 = vmatprep.mubr.bf16.mxu0 0
    %806 = vmatmul.mubr.bf16.gmra.mxu0 %v771
    %v807 = vpop.f32.mrf.mxu0
    %v808 = vadd.f32 %v757, %v807
    %v809 = vpop.f32.mrf.mxu0
    %v810 = vpop.f32.mrf.mxu0
    %v811 = vadd.f32 %v757, %v810
    %v812 = vpop.f32.mrf.mxu0
    %813 = vdwg.mxu0
    %v814 = vmul.f32 %v808, 0.70710677
    %v815 = vmul.f32 %v811, 0.70710677
    %v816 = vand.u32 2147483647, %v814
    %v817 = vand.u32 2147483647, %v815
    %v818 = vmul.f32 %v816, 0.3275911
    %v819 = vmul.f32 %v817, 0.3275911
    %v820 = vadd.f32 %v818, 1.0
    %v821 = vadd.f32 %v819, 1.0
    %v822 = vrcp.pop %v820
    %v823 = vmul.f32 1.0, %v822
    %v824 = vrcp.pop %v821
    %v825 = vmul.f32 1.0, %v824
    %v826 = vmul.f32 %v823, 1.0614054
    %v827 = vmul.f32 %v825, 1.0614054
    %v828 = vadd.f32 %v826, -1.4531521
    %v829 = vadd.f32 %v827, -1.4531521
    %v830 = vmul.f32 %v828, %v823
    %v831 = vmul.f32 %v829, %v825
    %v832 = vadd.f32 %v830, 1.4214138
    %v833 = vadd.f32 %v831, 1.4214138
    %v834 = vmul.f32 %v832, %v823
    %v835 = vmul.f32 %v833, %v825
    %v836 = vadd.f32 %v834, -0.28449672
    %v837 = vadd.f32 %v835, -0.28449672
    %v838 = vmul.f32 %v836, %v823
    %v839 = vmul.f32 %v837, %v825
    %v840 = vadd.f32 %v838, 0.2548296
    %v841 = vadd.f32 %v839, 0.2548296
    %v842 = vmul.f32 %v840, %v823
    %v843 = vmul.f32 %v841, %v825
    %v844 = vsub.f32 0.0, %v816
    %v845 = vsub.f32 0.0, %v817
    %v846 = vmul.f32 %v844, %v816
    %v847 = vmul.f32 %v845, %v817
    %v848 = vmul.f32 %v846, 1.442695
    %v849 = vpow.pop %v848
    %v850 = vmul.f32 %v847, 1.442695
    %v851 = vpow.pop %v850
    %v852 = vmul.f32 %v842, %v849
    %v853 = vmul.f32 %v843, %v851
    %v854 = vsub.f32 1.0, %v852
    %v855 = vsub.f32 1.0, %v853
    %vm856 = vcmp.ge.f32.partialorder %v814, 0.0
    %vm857 = vcmp.ge.f32.partialorder %v815, 0.0
    %v858 = vsub.f32 0.0, %v854
    %v859 = vsub.f32 0.0, %v855
    %v860 = vsel %vm856, %v854, %v858
    %v861 = vsel %vm857, %v855, %v859
    %v862 = vmul.f32 %v808, 0.5
    %v863 = vmul.f32 %v811, 0.5
    %v864 = vadd.f32 %v860, 1.0
    %v865 = vadd.f32 %v861, 1.0
    %v866 = vmul.f32 %v862, %v864
    %v867 = vmul.f32 %v863, %v865
    %v868 = vld [vmem:[%s6] sm:$0xf]
    %v869 = vld [vmem:[%s6 + $0x4] sm:$0xf]
    %v870 = vld [vmem:[%s6 + $0x8] sm:$0xf]
    %v871 = vld [vmem:[%s6 + $0xc] sm:$0xf]
    %v872 = vld [vmem:[%s6 + $0x10] sm:$0xf]
    %v873 = vld [vmem:[%s6 + $0x14] sm:$0xf]
    %v874 = vld [vmem:[%s6 + $0x18] sm:$0xf]
    %v875 = vld [vmem:[%s6 + $0x1c] sm:$0xf]
    %v876 = vpack.c.bf16 %v867, %v866
    %v877 = vlaneseq
    %v878 = vshrl.u32 %v877, 7
    %v879 = vsub.s32 5, %v878
    %v880 = vrot.slane %v88, %v879
    %v889 = vunpack.c.l.b16 %v868
    %v890 = vunpack.c.l.b16 %v869
    %v891 = vunpack.c.l.b16 %v870
    %v892 = vunpack.c.l.b16 %v871
    %v893 = vunpack.c.l.b16 %v872
    %v894 = vunpack.c.l.b16 %v873
    %v895 = vunpack.c.l.b16 %v874
    %v896 = vunpack.c.l.b16 %v875
    %v897 = vpack.c.b16 %v890, %v889
    %v898 = vpack.c.b16 %v892, %v891
    %v899 = vpack.c.b16 %v894, %v893
    %v900 = vpack.c.b16 %v896, %v895
    %vm905 = vcmask 523264
    %v907 = vsel %vm905, %v876, 0
    %909 = vmatprep.subr.bf16.mxu0 0
    %910 = vmatpush1.bf16.msra.mxu0 0
    %911 = vmatprep.subr.bf16.mxu0 0
    %912 = vmatpush1.bf16.msra.mxu0 0
    %913 = vmatprep.subr.bf16.mxu0 0
    %914 = vmatpush1.bf16.msra.mxu0 0
    %915 = vmatprep.subr.bf16.mxu0 0
    %916 = vmatpush1.bf16.msra.mxu0 0
    %917 = vmatprep.subr.bf16.mxu0 0
    %918 = vmatpush1.bf16.msra.mxu0 %v900
    %919 = vmatprep.subr.bf16.mxu0 0
    %920 = vmatpush1.bf16.msra.mxu0 %v899
    %921 = vmatprep.subr.bf16.mxu0 0
    %922 = vmatpush1.bf16.msra.mxu0 %v898
    %923 = vmatprep.subr.bf16.mxu0 0
    %924 = vmatpush1.bf16.msra.mxu0 %v897
    %925 = vmatprep.subr.bf16.mxu0 0
    %926 = vmatpush2.bf16.msra.mxu0 0
    %927 = vmatprep.subr.bf16.mxu0 0
    %928 = vmatpush2.bf16.msra.mxu0 0
    %929 = vmatprep.subr.bf16.mxu0 0
    %930 = vmatpush2.bf16.msra.mxu0 0
    %931 = vmatprep.subr.bf16.mxu0 0
    %932 = vmatpush2.bf16.msra.mxu0 0
    %933 = vmatprep.subr.bf16.mxu0 0
    %934 = vmatpush2.bf16.msra.mxu0 0
    %935 = vmatprep.subr.bf16.mxu0 0
    %936 = vmatpush2.bf16.msra.mxu0 0
    %937 = vmatprep.subr.bf16.mxu0 0
    %938 = vmatpush2.bf16.msra.mxu0 0
    %939 = vmatprep.subr.bf16.mxu0 0
    %940 = vmatpush2.bf16.msra.mxu0 0
    %941 = vmatprep.mubr.bf16.mxu0 0
    %942 = vmatmul.mubr.bf16.gmra.mxu0 %v907
    %v943 = vpop.f32.mrf.mxu0
    %v944 = vadd.f32 %v880, %v943
    %v945 = vpop.f32.mrf.mxu0
    %v946 = vpop.f32.mrf.mxu0
    %v947 = vadd.f32 %v880, %v946
    %v948 = vpop.f32.mrf.mxu0
    %949 = vdwg.mxu0
    %v950 = vadd.f32 %v944, %v747
    %v951 = vadd.f32 %v947, %v748
    %v952 = vsel %vm34, %v950, 0.0
    %953 = vadd.xlane.f32.xlu0 %v952
    %v954 = vpop.xlane.xlu0 %953
    %v955 = vsel %vm34, %v951, 0.0
    %956 = vadd.xlane.f32.xlu0 %v955
    %v957 = vpop.xlane.xlu0 %956
    %v958 = vmul.f32 %v954, %v41
    %v959 = vmul.f32 %v957, %v41
    %v960 = vsub.f32 %v950, %v958
    %v961 = vsub.f32 %v951, %v959
    %v962 = vmul.f32 %v960, %v960
    %v963 = vmul.f32 %v961, %v961
    %v964 = vsel %vm34, %v962, 0.0
    %965 = vadd.xlane.f32.xlu0 %v964
    %v966 = vpop.xlane.xlu0 %965
    %v967 = vsel %vm34, %v963, 0.0
    %968 = vadd.xlane.f32.xlu0 %v967
    %v969 = vpop.xlane.xlu0 %968
    %v970 = vmul.f32 %v966, %v41
    %v971 = vmul.f32 %v969, %v41
    %v972 = vadd.f32 %v970, 1e-12
    %v973 = vadd.f32 %v971, 1e-12
    %v974 = vrsqrt.pop %v972
    %v975 = vrsqrt.pop %v973
    %v976 = vmul.f32 %v960, %v974
    %v977 = vmul.f32 %v961, %v975
    %v978 = vlaneseq
    %v979 = vshrl.u32 %v978, 7
    %v980 = vsub.s32 6, %v979
    %v981 = vrot.slane %v88, %v980
    %v982 = vmul.f32 %v976, %v981
    %v983 = vmul.f32 %v977, %v981
    %v984 = vlaneseq
    %v985 = vshrl.u32 %v984, 7
    %v986 = vsub.s32 7, %v985
    %v987 = vrot.slane %v88, %v986
    %v988 = vadd.f32 %v982, %v987
    %v989 = vadd.f32 %v983, %v987
    %s990 = scalar_lea.vmem %s7, 8
    %v991 = vld [vmem:[%s990] sm:$0xff]
    %s992 = scalar_lea.vmem %s3, 16
    %v993 = vld [vmem:[%s992] sm:$0xf]
    %v994 = vld [vmem:[%s992 + $0x4] sm:$0xf]
    %v995 = vld [vmem:[%s992 + $0x8] sm:$0xf]
    %v996 = vld [vmem:[%s992 + $0xc] sm:$0xf]
    %v997 = vpack.c.bf16 %v989, %v988
    %v998 = vlaneseq
    %v999 = vshrl.u32 %v998, 7
    %v1000 = vsub.s32 0, %v999
    %v1001 = vrot.slane %v991, %v1000
    %v1006 = vunpack.c.l.b16 %v993
    %v1007 = vunpack.c.l.b16 %v994
    %v1008 = vunpack.c.l.b16 %v995
    %v1009 = vunpack.c.l.b16 %v996
    %v1010 = vpack.c.b16 %v1007, %v1006
    %v1011 = vpack.c.b16 %v1009, %v1008
    %v1015 = vsel %vm34, %v997, 0
    %1017 = vmatprep.subr.bf16.mxu0 0
    %1018 = vmatpush1.bf16.msra.mxu0 0
    %1019 = vmatprep.subr.bf16.mxu0 0
    %1020 = vmatpush1.bf16.msra.mxu0 0
    %1021 = vmatprep.subr.bf16.mxu0 0
    %1022 = vmatpush1.bf16.msra.mxu0 0
    %1023 = vmatprep.subr.bf16.mxu0 0
    %1024 = vmatpush1.bf16.msra.mxu0 0
    %1025 = vmatprep.subr.bf16.mxu0 0
    %1026 = vmatpush1.bf16.msra.mxu0 0
    %1027 = vmatprep.subr.bf16.mxu0 0
    %1028 = vmatpush1.bf16.msra.mxu0 0
    %1029 = vmatprep.subr.bf16.mxu0 0
    %1030 = vmatpush1.bf16.msra.mxu0 %v1011
    %1031 = vmatprep.subr.bf16.mxu0 0
    %1032 = vmatpush1.bf16.msra.mxu0 %v1010
    %1033 = vmatprep.subr.bf16.mxu0 0
    %1034 = vmatpush2.bf16.msra.mxu0 0
    %1035 = vmatprep.subr.bf16.mxu0 0
    %1036 = vmatpush2.bf16.msra.mxu0 0
    %1037 = vmatprep.subr.bf16.mxu0 0
    %1038 = vmatpush2.bf16.msra.mxu0 0
    %1039 = vmatprep.subr.bf16.mxu0 0
    %1040 = vmatpush2.bf16.msra.mxu0 0
    %1041 = vmatprep.subr.bf16.mxu0 0
    %1042 = vmatpush2.bf16.msra.mxu0 0
    %1043 = vmatprep.subr.bf16.mxu0 0
    %1044 = vmatpush2.bf16.msra.mxu0 0
    %1045 = vmatprep.subr.bf16.mxu0 0
    %1046 = vmatpush2.bf16.msra.mxu0 0
    %1047 = vmatprep.subr.bf16.mxu0 0
    %1048 = vmatpush2.bf16.msra.mxu0 0
    %1049 = vmatprep.mubr.bf16.mxu0 0
    %1050 = vmatmul.mubr.bf16.gmra.mxu0 %v1015
    %v1051 = vpop.f32.mrf.mxu0
    %v1052 = vadd.f32 %v1001, %v1051
    %v1053 = vpop.f32.mrf.mxu0
    %v1054 = vpop.f32.mrf.mxu0
    %v1055 = vadd.f32 %v1001, %v1054
    %v1056 = vpop.f32.mrf.mxu0
    %1057 = vdwg.mxu0
    %s1058 = scalar_lea.vmem %s4, 16
    %v1059 = vld [vmem:[%s1058] sm:$0xf]
    %v1060 = vld [vmem:[%s1058 + $0x4] sm:$0xf]
    %v1061 = vld [vmem:[%s1058 + $0x8] sm:$0xf]
    %v1062 = vld [vmem:[%s1058 + $0xc] sm:$0xf]
    %v1063 = vpack.c.bf16 %v1052, %v1052
    %v1064 = vpack.c.bf16 %v1055, %v1055
    %1066 = vrot.lane.b32.xlu0 %v1063, 96
    %v1067 = vpop.permute.xlu0 %1066
    %v1069 = vsel %vm163, %v1063, 0
    %v1072 = vsel %vm163, %v1067, 0
    %1074 = vmatprep.subr.bf16.mxu0 0
    %1075 = vmatpush1.bf16.xpose.msra.mxu0 0
    %1076 = vmatprep.subr.bf16.mxu0 0
    %1077 = vmatpush1.bf16.xpose.msra.mxu0 0
    %1078 = vmatprep.subr.bf16.mxu0 0
    %1079 = vmatpush1.bf16.xpose.msra.mxu0 0
    %1080 = vmatprep.subr.bf16.mxu0 0
    %1081 = vmatpush1.bf16.xpose.msra.mxu0 0
    %1082 = vmatprep.subr.bf16.mxu0 0
    %1083 = vmatpush1.bf16.xpose.msra.mxu0 0
    %1084 = vmatprep.subr.bf16.mxu0 0
    %1085 = vmatpush1.bf16.xpose.msra.mxu0 0
    %1086 = vmatprep.subr.bf16.mxu0 0
    %1087 = vmatpush1.bf16.xpose.msra.mxu0 0
    %1088 = vmatprep.subr.bf16.mxu0 0
    %1089 = vmatpush1.bf16.xpose.msra.mxu0 %v1072
    %1090 = vmatprep.subr.bf16.mxu0 0
    %1091 = vmatpush2.bf16.xpose.msra.mxu0 0
    %1092 = vmatprep.subr.bf16.mxu0 0
    %1093 = vmatpush2.bf16.xpose.msra.mxu0 0
    %1094 = vmatprep.subr.bf16.mxu0 0
    %1095 = vmatpush2.bf16.xpose.msra.mxu0 0
    %1096 = vmatprep.subr.bf16.mxu0 0
    %1097 = vmatpush2.bf16.xpose.msra.mxu0 0
    %1098 = vmatprep.subr.bf16.mxu0 0
    %1099 = vmatpush2.bf16.xpose.msra.mxu0 0
    %1100 = vmatprep.subr.bf16.mxu0 0
    %1101 = vmatpush2.bf16.xpose.msra.mxu0 0
    %1102 = vmatprep.subr.bf16.mxu0 0
    %1103 = vmatpush2.bf16.xpose.msra.mxu0 0
    %1104 = vmatprep.subr.bf16.mxu0 0
    %1105 = vmatpush2.bf16.xpose.msra.mxu0 0
    %1106 = vmatprep.mubr.bf16.mxu0 0
    %1107 = vmatmul.mubr.bf16.gmra.mxu0 %v1069
    %v1108 = vpop.f32.mrf.mxu0
    %v1109 = vadd.f32 %v81, %v1108
    %v1110 = vpop.f32.mrf.mxu0
    %v1111 = vpop.f32.mrf.mxu0
    %v1112 = vpop.f32.mrf.mxu0
    %1113 = vdwg.mxu0
    %1115 = vrot.lane.b32.xlu0 %v1064, 96
    %v1116 = vpop.permute.xlu0 %1115
    %v1118 = vsel %vm163, %v1064, 0
    %v1121 = vsel %vm163, %v1116, 0
    %1123 = vmatprep.subr.bf16.mxu0 0
    %1124 = vmatpush1.bf16.xpose.msra.mxu0 0
    %1125 = vmatprep.subr.bf16.mxu0 0
    %1126 = vmatpush1.bf16.xpose.msra.mxu0 0
    %1127 = vmatprep.subr.bf16.mxu0 0
    %1128 = vmatpush1.bf16.xpose.msra.mxu0 0
    %1129 = vmatprep.subr.bf16.mxu0 0
    %1130 = vmatpush1.bf16.xpose.msra.mxu0 0
    %1131 = vmatprep.subr.bf16.mxu0 0
    %1132 = vmatpush1.bf16.xpose.msra.mxu0 0
    %1133 = vmatprep.subr.bf16.mxu0 0
    %1134 = vmatpush1.bf16.xpose.msra.mxu0 0
    %1135 = vmatprep.subr.bf16.mxu0 0
    %1136 = vmatpush1.bf16.xpose.msra.mxu0 0
    %1137 = vmatprep.subr.bf16.mxu0 0
    %1138 = vmatpush1.bf16.xpose.msra.mxu0 %v1121
    %1139 = vmatprep.subr.bf16.mxu0 0
    %1140 = vmatpush2.bf16.xpose.msra.mxu0 0
    %1141 = vmatprep.subr.bf16.mxu0 0
    %1142 = vmatpush2.bf16.xpose.msra.mxu0 0
    %1143 = vmatprep.subr.bf16.mxu0 0
    %1144 = vmatpush2.bf16.xpose.msra.mxu0 0
    %1145 = vmatprep.subr.bf16.mxu0 0
    %1146 = vmatpush2.bf16.xpose.msra.mxu0 0
    %1147 = vmatprep.subr.bf16.mxu0 0
    %1148 = vmatpush2.bf16.xpose.msra.mxu0 0
    %1149 = vmatprep.subr.bf16.mxu0 0
    %1150 = vmatpush2.bf16.xpose.msra.mxu0 0
    %1151 = vmatprep.subr.bf16.mxu0 0
    %1152 = vmatpush2.bf16.xpose.msra.mxu0 0
    %1153 = vmatprep.subr.bf16.mxu0 0
    %1154 = vmatpush2.bf16.xpose.msra.mxu0 0
    %1155 = vmatprep.mubr.bf16.mxu0 0
    %1156 = vmatmul.mubr.bf16.gmra.mxu0 %v1118
    %v1157 = vpop.f32.mrf.mxu0
    %v1158 = vadd.f32 %v85, %v1157
    %v1159 = vpop.f32.mrf.mxu0
    %v1160 = vpop.f32.mrf.mxu0
    %v1161 = vpop.f32.mrf.mxu0
    %1162 = vdwg.mxu0
    %v1163 = vsel %vm259, %v1109, -inf
    %1164 = vmax.xlane.f32.xlu0 %v1163
    %v1165 = vpop.xlane.xlu0 %1164
    %v1166 = vsel %vm259, %v1158, -inf
    %1167 = vmax.xlane.f32.xlu0 %v1166
    %v1168 = vpop.xlane.xlu0 %1167
    %v1169 = vsub.f32 %v1109, %v1165
    %v1170 = vsub.f32 %v1158, %v1168
    %v1171 = vmul.f32 %v1169, 1.442695
    %v1172 = vpow.pop %v1171
    %v1173 = vmul.f32 %v1170, 1.442695
    %v1174 = vpow.pop %v1173
    %v1175 = vsel %vm259, %v1172, 0.0
    %1176 = vadd.xlane.f32.xlu0 %v1175
    %v1177 = vpop.xlane.xlu0 %1176
    %v1178 = vsel %vm259, %v1174, 0.0
    %1179 = vadd.xlane.f32.xlu0 %v1178
    %v1180 = vpop.xlane.xlu0 %1179
    %v1181 = vrcp.pop %v1177
    %v1182 = vmul.f32 %v1172, %v1181
    %v1183 = vrcp.pop %v1180
    %v1184 = vmul.f32 %v1174, %v1183
    %v1185 = vpack.c.bf16 %v1182, %v1182
    %v1186 = vpack.c.bf16 %v1184, %v1184
    %1187 = vrot.lane.b32.xlu0 %v1063, 64
    %v1188 = vpop.permute.xlu0 %1187
    %v1190 = vsel %vm259, %v1185, 0
    %v1193 = vsel %vm289, %v1188, 0
    %1195 = vmatprep.subr.bf16.mxu0 0
    %1196 = vmatpush1.bf16.msra.mxu0 0
    %1197 = vmatprep.subr.bf16.mxu0 0
    %1198 = vmatpush1.bf16.msra.mxu0 0
    %1199 = vmatprep.subr.bf16.mxu0 0
    %1200 = vmatpush1.bf16.msra.mxu0 0
    %1201 = vmatprep.subr.bf16.mxu0 0
    %1202 = vmatpush1.bf16.msra.mxu0 0
    %1203 = vmatprep.subr.bf16.mxu0 0
    %1204 = vmatpush1.bf16.msra.mxu0 0
    %1205 = vmatprep.subr.bf16.mxu0 0
    %1206 = vmatpush1.bf16.msra.mxu0 0
    %1207 = vmatprep.subr.bf16.mxu0 0
    %1208 = vmatpush1.bf16.msra.mxu0 0
    %1209 = vmatprep.subr.bf16.mxu0 0
    %1210 = vmatpush1.bf16.msra.mxu0 %v1193
    %1211 = vmatprep.subr.bf16.mxu0 0
    %1212 = vmatpush2.bf16.msra.mxu0 0
    %1213 = vmatprep.subr.bf16.mxu0 0
    %1214 = vmatpush2.bf16.msra.mxu0 0
    %1215 = vmatprep.subr.bf16.mxu0 0
    %1216 = vmatpush2.bf16.msra.mxu0 0
    %1217 = vmatprep.subr.bf16.mxu0 0
    %1218 = vmatpush2.bf16.msra.mxu0 0
    %1219 = vmatprep.subr.bf16.mxu0 0
    %1220 = vmatpush2.bf16.msra.mxu0 0
    %1221 = vmatprep.subr.bf16.mxu0 0
    %1222 = vmatpush2.bf16.msra.mxu0 0
    %1223 = vmatprep.subr.bf16.mxu0 0
    %1224 = vmatpush2.bf16.msra.mxu0 0
    %1225 = vmatprep.subr.bf16.mxu0 0
    %1226 = vmatpush2.bf16.msra.mxu0 0
    %1227 = vmatprep.mubr.bf16.mxu0 0
    %1228 = vmatmul.mubr.bf16.gmra.mxu0 %v1190
    %v1229 = vpop.f32.mrf.mxu0
    %v1230 = vadd.f32 0.0, %v1229
    %v1231 = vpop.f32.mrf.mxu0
    %v1232 = vpop.f32.mrf.mxu0
    %v1233 = vpop.f32.mrf.mxu0
    %1234 = vdwg.mxu0
    %1235 = vrot.lane.b32.xlu0 %v1064, 64
    %v1236 = vpop.permute.xlu0 %1235
    %v1238 = vsel %vm259, %v1186, 0
    %v1241 = vsel %vm289, %v1236, 0
    %1243 = vmatprep.subr.bf16.mxu0 0
    %1244 = vmatpush1.bf16.msra.mxu0 0
    %1245 = vmatprep.subr.bf16.mxu0 0
    %1246 = vmatpush1.bf16.msra.mxu0 0
    %1247 = vmatprep.subr.bf16.mxu0 0
    %1248 = vmatpush1.bf16.msra.mxu0 0
    %1249 = vmatprep.subr.bf16.mxu0 0
    %1250 = vmatpush1.bf16.msra.mxu0 0
    %1251 = vmatprep.subr.bf16.mxu0 0
    %1252 = vmatpush1.bf16.msra.mxu0 0
    %1253 = vmatprep.subr.bf16.mxu0 0
    %1254 = vmatpush1.bf16.msra.mxu0 0
    %1255 = vmatprep.subr.bf16.mxu0 0
    %1256 = vmatpush1.bf16.msra.mxu0 0
    %1257 = vmatprep.subr.bf16.mxu0 0
    %1258 = vmatpush1.bf16.msra.mxu0 %v1241
    %1259 = vmatprep.subr.bf16.mxu0 0
    %1260 = vmatpush2.bf16.msra.mxu0 0
    %1261 = vmatprep.subr.bf16.mxu0 0
    %1262 = vmatpush2.bf16.msra.mxu0 0
    %1263 = vmatprep.subr.bf16.mxu0 0
    %1264 = vmatpush2.bf16.msra.mxu0 0
    %1265 = vmatprep.subr.bf16.mxu0 0
    %1266 = vmatpush2.bf16.msra.mxu0 0
    %1267 = vmatprep.subr.bf16.mxu0 0
    %1268 = vmatpush2.bf16.msra.mxu0 0
    %1269 = vmatprep.subr.bf16.mxu0 0
    %1270 = vmatpush2.bf16.msra.mxu0 0
    %1271 = vmatprep.subr.bf16.mxu0 0
    %1272 = vmatpush2.bf16.msra.mxu0 0
    %1273 = vmatprep.subr.bf16.mxu0 0
    %1274 = vmatpush2.bf16.msra.mxu0 0
    %1275 = vmatprep.mubr.bf16.mxu0 0
    %1276 = vmatmul.mubr.bf16.gmra.mxu0 %v1238
    %v1277 = vpop.f32.mrf.mxu0
    %v1278 = vadd.f32 0.0, %v1277
    %v1279 = vpop.f32.mrf.mxu0
    %v1280 = vpop.f32.mrf.mxu0
    %v1281 = vpop.f32.mrf.mxu0
    %1282 = vdwg.mxu0
    %v1283 = vpack.c.bf16 %v1278, %v1230
    %1284 = vrot.lane.b32.xlu0 %v1063, 112
    %v1285 = vpop.permute.xlu0 %1284
    %1286 = vrot.lane.b32.xlu0 %v1063, 80
    %v1287 = vpop.permute.xlu0 %1286
    %v1289 = vsel %vm163, %v1285, 0
    %v1292 = vsel %vm163, %v1287, 0
    %1294 = vmatprep.subr.bf16.mxu0 0
    %1295 = vmatpush1.bf16.xpose.msra.mxu0 0
    %1296 = vmatprep.subr.bf16.mxu0 0
    %1297 = vmatpush1.bf16.xpose.msra.mxu0 0
    %1298 = vmatprep.subr.bf16.mxu0 0
    %1299 = vmatpush1.bf16.xpose.msra.mxu0 0
    %1300 = vmatprep.subr.bf16.mxu0 0
    %1301 = vmatpush1.bf16.xpose.msra.mxu0 0
    %1302 = vmatprep.subr.bf16.mxu0 0
    %1303 = vmatpush1.bf16.xpose.msra.mxu0 0
    %1304 = vmatprep.subr.bf16.mxu0 0
    %1305 = vmatpush1.bf16.xpose.msra.mxu0 0
    %1306 = vmatprep.subr.bf16.mxu0 0
    %1307 = vmatpush1.bf16.xpose.msra.mxu0 0
    %1308 = vmatprep.subr.bf16.mxu0 0
    %1309 = vmatpush1.bf16.xpose.msra.mxu0 %v1292
    %1310 = vmatprep.subr.bf16.mxu0 0
    %1311 = vmatpush2.bf16.xpose.msra.mxu0 0
    %1312 = vmatprep.subr.bf16.mxu0 0
    %1313 = vmatpush2.bf16.xpose.msra.mxu0 0
    %1314 = vmatprep.subr.bf16.mxu0 0
    %1315 = vmatpush2.bf16.xpose.msra.mxu0 0
    %1316 = vmatprep.subr.bf16.mxu0 0
    %1317 = vmatpush2.bf16.xpose.msra.mxu0 0
    %1318 = vmatprep.subr.bf16.mxu0 0
    %1319 = vmatpush2.bf16.xpose.msra.mxu0 0
    %1320 = vmatprep.subr.bf16.mxu0 0
    %1321 = vmatpush2.bf16.xpose.msra.mxu0 0
    %1322 = vmatprep.subr.bf16.mxu0 0
    %1323 = vmatpush2.bf16.xpose.msra.mxu0 0
    %1324 = vmatprep.subr.bf16.mxu0 0
    %1325 = vmatpush2.bf16.xpose.msra.mxu0 0
    %1326 = vmatprep.mubr.bf16.mxu0 0
    %1327 = vmatmul.mubr.bf16.gmra.mxu0 %v1289
    %v1328 = vpop.f32.mrf.mxu0
    %v1329 = vadd.f32 %v81, %v1328
    %v1330 = vpop.f32.mrf.mxu0
    %v1331 = vpop.f32.mrf.mxu0
    %v1332 = vpop.f32.mrf.mxu0
    %1333 = vdwg.mxu0
    %1334 = vrot.lane.b32.xlu0 %v1064, 112
    %v1335 = vpop.permute.xlu0 %1334
    %1336 = vrot.lane.b32.xlu0 %v1064, 80
    %v1337 = vpop.permute.xlu0 %1336
    %v1339 = vsel %vm163, %v1335, 0
    %v1342 = vsel %vm163, %v1337, 0
    %1344 = vmatprep.subr.bf16.mxu0 0
    %1345 = vmatpush1.bf16.xpose.msra.mxu0 0
    %1346 = vmatprep.subr.bf16.mxu0 0
    %1347 = vmatpush1.bf16.xpose.msra.mxu0 0
    %1348 = vmatprep.subr.bf16.mxu0 0
    %1349 = vmatpush1.bf16.xpose.msra.mxu0 0
    %1350 = vmatprep.subr.bf16.mxu0 0
    %1351 = vmatpush1.bf16.xpose.msra.mxu0 0
    %1352 = vmatprep.subr.bf16.mxu0 0
    %1353 = vmatpush1.bf16.xpose.msra.mxu0 0
    %1354 = vmatprep.subr.bf16.mxu0 0
    %1355 = vmatpush1.bf16.xpose.msra.mxu0 0
    %1356 = vmatprep.subr.bf16.mxu0 0
    %1357 = vmatpush1.bf16.xpose.msra.mxu0 0
    %1358 = vmatprep.subr.bf16.mxu0 0
    %1359 = vmatpush1.bf16.xpose.msra.mxu0 %v1342
    %1360 = vmatprep.subr.bf16.mxu0 0
    %1361 = vmatpush2.bf16.xpose.msra.mxu0 0
    %1362 = vmatprep.subr.bf16.mxu0 0
    %1363 = vmatpush2.bf16.xpose.msra.mxu0 0
    %1364 = vmatprep.subr.bf16.mxu0 0
    %1365 = vmatpush2.bf16.xpose.msra.mxu0 0
    %1366 = vmatprep.subr.bf16.mxu0 0
    %1367 = vmatpush2.bf16.xpose.msra.mxu0 0
    %1368 = vmatprep.subr.bf16.mxu0 0
    %1369 = vmatpush2.bf16.xpose.msra.mxu0 0
    %1370 = vmatprep.subr.bf16.mxu0 0
    %1371 = vmatpush2.bf16.xpose.msra.mxu0 0
    %1372 = vmatprep.subr.bf16.mxu0 0
    %1373 = vmatpush2.bf16.xpose.msra.mxu0 0
    %1374 = vmatprep.subr.bf16.mxu0 0
    %1375 = vmatpush2.bf16.xpose.msra.mxu0 0
    %1376 = vmatprep.mubr.bf16.mxu0 0
    %1377 = vmatmul.mubr.bf16.gmra.mxu0 %v1339
    %v1378 = vpop.f32.mrf.mxu0
    %v1379 = vadd.f32 %v85, %v1378
    %v1380 = vpop.f32.mrf.mxu0
    %v1381 = vpop.f32.mrf.mxu0
    %v1382 = vpop.f32.mrf.mxu0
    %1383 = vdwg.mxu0
    %v1384 = vsel %vm259, %v1329, -inf
    %1385 = vmax.xlane.f32.xlu0 %v1384
    %v1386 = vpop.xlane.xlu0 %1385
    %v1387 = vsel %vm259, %v1379, -inf
    %1388 = vmax.xlane.f32.xlu0 %v1387
    %v1389 = vpop.xlane.xlu0 %1388
    %v1390 = vsub.f32 %v1329, %v1386
    %v1391 = vsub.f32 %v1379, %v1389
    %v1392 = vmul.f32 %v1390, 1.442695
    %v1393 = vpow.pop %v1392
    %v1394 = vmul.f32 %v1391, 1.442695
    %v1395 = vpow.pop %v1394
    %v1396 = vsel %vm259, %v1393, 0.0
    %1397 = vadd.xlane.f32.xlu0 %v1396
    %v1398 = vpop.xlane.xlu0 %1397
    %v1399 = vsel %vm259, %v1395, 0.0
    %1400 = vadd.xlane.f32.xlu0 %v1399
    %v1401 = vpop.xlane.xlu0 %1400
    %v1402 = vrcp.pop %v1398
    %v1403 = vmul.f32 %v1393, %v1402
    %v1404 = vrcp.pop %v1401
    %v1405 = vmul.f32 %v1395, %v1404
    %v1406 = vpack.c.bf16 %v1403, %v1403
    %v1407 = vpack.c.bf16 %v1405, %v1405
    %1408 = vrot.lane.b32.xlu0 %v1063, 48
    %v1409 = vpop.permute.xlu0 %1408
    %v1411 = vsel %vm259, %v1406, 0
    %v1414 = vsel %vm289, %v1409, 0
    %1416 = vmatprep.subr.bf16.mxu0 0
    %1417 = vmatpush1.bf16.msra.mxu0 0
    %1418 = vmatprep.subr.bf16.mxu0 0
    %1419 = vmatpush1.bf16.msra.mxu0 0
    %1420 = vmatprep.subr.bf16.mxu0 0
    %1421 = vmatpush1.bf16.msra.mxu0 0
    %1422 = vmatprep.subr.bf16.mxu0 0
    %1423 = vmatpush1.bf16.msra.mxu0 0
    %1424 = vmatprep.subr.bf16.mxu0 0
    %1425 = vmatpush1.bf16.msra.mxu0 0
    %1426 = vmatprep.subr.bf16.mxu0 0
    %1427 = vmatpush1.bf16.msra.mxu0 0
    %1428 = vmatprep.subr.bf16.mxu0 0
    %1429 = vmatpush1.bf16.msra.mxu0 0
    %1430 = vmatprep.subr.bf16.mxu0 0
    %1431 = vmatpush1.bf16.msra.mxu0 %v1414
    %1432 = vmatprep.subr.bf16.mxu0 0
    %1433 = vmatpush2.bf16.msra.mxu0 0
    %1434 = vmatprep.subr.bf16.mxu0 0
    %1435 = vmatpush2.bf16.msra.mxu0 0
    %1436 = vmatprep.subr.bf16.mxu0 0
    %1437 = vmatpush2.bf16.msra.mxu0 0
    %1438 = vmatprep.subr.bf16.mxu0 0
    %1439 = vmatpush2.bf16.msra.mxu0 0
    %1440 = vmatprep.subr.bf16.mxu0 0
    %1441 = vmatpush2.bf16.msra.mxu0 0
    %1442 = vmatprep.subr.bf16.mxu0 0
    %1443 = vmatpush2.bf16.msra.mxu0 0
    %1444 = vmatprep.subr.bf16.mxu0 0
    %1445 = vmatpush2.bf16.msra.mxu0 0
    %1446 = vmatprep.subr.bf16.mxu0 0
    %1447 = vmatpush2.bf16.msra.mxu0 0
    %1448 = vmatprep.mubr.bf16.mxu0 0
    %1449 = vmatmul.mubr.bf16.gmra.mxu0 %v1411
    %v1450 = vpop.f32.mrf.mxu0
    %v1451 = vadd.f32 0.0, %v1450
    %v1452 = vpop.f32.mrf.mxu0
    %v1453 = vpop.f32.mrf.mxu0
    %v1454 = vpop.f32.mrf.mxu0
    %1455 = vdwg.mxu0
    %1456 = vrot.lane.b32.xlu0 %v1064, 48
    %v1457 = vpop.permute.xlu0 %1456
    %v1459 = vsel %vm259, %v1407, 0
    %v1462 = vsel %vm289, %v1457, 0
    %1464 = vmatprep.subr.bf16.mxu0 0
    %1465 = vmatpush1.bf16.msra.mxu0 0
    %1466 = vmatprep.subr.bf16.mxu0 0
    %1467 = vmatpush1.bf16.msra.mxu0 0
    %1468 = vmatprep.subr.bf16.mxu0 0
    %1469 = vmatpush1.bf16.msra.mxu0 0
    %1470 = vmatprep.subr.bf16.mxu0 0
    %1471 = vmatpush1.bf16.msra.mxu0 0
    %1472 = vmatprep.subr.bf16.mxu0 0
    %1473 = vmatpush1.bf16.msra.mxu0 0
    %1474 = vmatprep.subr.bf16.mxu0 0
    %1475 = vmatpush1.bf16.msra.mxu0 0
    %1476 = vmatprep.subr.bf16.mxu0 0
    %1477 = vmatpush1.bf16.msra.mxu0 0
    %1478 = vmatprep.subr.bf16.mxu0 0
    %1479 = vmatpush1.bf16.msra.mxu0 %v1462
    %1480 = vmatprep.subr.bf16.mxu0 0
    %1481 = vmatpush2.bf16.msra.mxu0 0
    %1482 = vmatprep.subr.bf16.mxu0 0
    %1483 = vmatpush2.bf16.msra.mxu0 0
    %1484 = vmatprep.subr.bf16.mxu0 0
    %1485 = vmatpush2.bf16.msra.mxu0 0
    %1486 = vmatprep.subr.bf16.mxu0 0
    %1487 = vmatpush2.bf16.msra.mxu0 0
    %1488 = vmatprep.subr.bf16.mxu0 0
    %1489 = vmatpush2.bf16.msra.mxu0 0
    %1490 = vmatprep.subr.bf16.mxu0 0
    %1491 = vmatpush2.bf16.msra.mxu0 0
    %1492 = vmatprep.subr.bf16.mxu0 0
    %1493 = vmatpush2.bf16.msra.mxu0 0
    %1494 = vmatprep.subr.bf16.mxu0 0
    %1495 = vmatpush2.bf16.msra.mxu0 0
    %1496 = vmatprep.mubr.bf16.mxu0 0
    %1497 = vmatmul.mubr.bf16.gmra.mxu0 %v1459
    %v1498 = vpop.f32.mrf.mxu0
    %v1499 = vadd.f32 0.0, %v1498
    %v1500 = vpop.f32.mrf.mxu0
    %v1501 = vpop.f32.mrf.mxu0
    %v1502 = vpop.f32.mrf.mxu0
    %1503 = vdwg.mxu0
    %v1504 = vpack.c.bf16 %v1499, %v1451
    %v1507 = vunpack.c.l.b16 %v1061
    %v1508 = vunpack.c.l.b16 %v1062
    %v1509 = vpack.c.b16 %v1508, %v1507
    %v1512 = vsel %vm163, %v1504, 0
    %1514 = vmatprep.subr.bf16.mxu0 0
    %1515 = vmatpush1.bf16.msra.mxu0 0
    %1516 = vmatprep.subr.bf16.mxu0 0
    %1517 = vmatpush1.bf16.msra.mxu0 0
    %1518 = vmatprep.subr.bf16.mxu0 0
    %1519 = vmatpush1.bf16.msra.mxu0 0
    %1520 = vmatprep.subr.bf16.mxu0 0
    %1521 = vmatpush1.bf16.msra.mxu0 0
    %1522 = vmatprep.subr.bf16.mxu0 0
    %1523 = vmatpush1.bf16.msra.mxu0 0
    %1524 = vmatprep.subr.bf16.mxu0 0
    %1525 = vmatpush1.bf16.msra.mxu0 0
    %1526 = vmatprep.subr.bf16.mxu0 0
    %1527 = vmatpush1.bf16.msra.mxu0 0
    %1528 = vmatprep.subr.bf16.mxu0 0
    %1529 = vmatpush1.bf16.msra.mxu0 %v1509
    %1530 = vmatprep.subr.bf16.mxu0 0
    %1531 = vmatpush2.bf16.msra.mxu0 0
    %1532 = vmatprep.subr.bf16.mxu0 0
    %1533 = vmatpush2.bf16.msra.mxu0 0
    %1534 = vmatprep.subr.bf16.mxu0 0
    %1535 = vmatpush2.bf16.msra.mxu0 0
    %1536 = vmatprep.subr.bf16.mxu0 0
    %1537 = vmatpush2.bf16.msra.mxu0 0
    %1538 = vmatprep.subr.bf16.mxu0 0
    %1539 = vmatpush2.bf16.msra.mxu0 0
    %1540 = vmatprep.subr.bf16.mxu0 0
    %1541 = vmatpush2.bf16.msra.mxu0 0
    %1542 = vmatprep.subr.bf16.mxu0 0
    %1543 = vmatpush2.bf16.msra.mxu0 0
    %1544 = vmatprep.subr.bf16.mxu0 0
    %1545 = vmatpush2.bf16.msra.mxu0 0
    %1546 = vmatprep.mubr.bf16.mxu0 0
    %1547 = vmatmul.mubr.bf16.gmra.mxu0 %v1512
    %v1548 = vpop.f32.mrf.mxu0
    %v1549 = vadd.f32 0.0, %v1548
    %v1550 = vpop.f32.mrf.mxu0
    %v1551 = vpop.f32.mrf.mxu0
    %v1552 = vadd.f32 0.0, %v1551
    %v1553 = vpop.f32.mrf.mxu0
    %1554 = vdwg.mxu0
    %v1557 = vunpack.c.l.b16 %v1059
    %v1558 = vunpack.c.l.b16 %v1060
    %v1559 = vpack.c.b16 %v1558, %v1557
    %v1562 = vsel %vm163, %v1283, 0
    %1564 = vmatprep.subr.bf16.mxu0 0
    %1565 = vmatpush1.bf16.msra.mxu0 0
    %1566 = vmatprep.subr.bf16.mxu0 0
    %1567 = vmatpush1.bf16.msra.mxu0 0
    %1568 = vmatprep.subr.bf16.mxu0 0
    %1569 = vmatpush1.bf16.msra.mxu0 0
    %1570 = vmatprep.subr.bf16.mxu0 0
    %1571 = vmatpush1.bf16.msra.mxu0 0
    %1572 = vmatprep.subr.bf16.mxu0 0
    %1573 = vmatpush1.bf16.msra.mxu0 0
    %1574 = vmatprep.subr.bf16.mxu0 0
    %1575 = vmatpush1.bf16.msra.mxu0 0
    %1576 = vmatprep.subr.bf16.mxu0 0
    %1577 = vmatpush1.bf16.msra.mxu0 0
    %1578 = vmatprep.subr.bf16.mxu0 0
    %1579 = vmatpush1.bf16.msra.mxu0 %v1559
    %1580 = vmatprep.subr.bf16.mxu0 0
    %1581 = vmatpush2.bf16.msra.mxu0 0
    %1582 = vmatprep.subr.bf16.mxu0 0
    %1583 = vmatpush2.bf16.msra.mxu0 0
    %1584 = vmatprep.subr.bf16.mxu0 0
    %1585 = vmatpush2.bf16.msra.mxu0 0
    %1586 = vmatprep.subr.bf16.mxu0 0
    %1587 = vmatpush2.bf16.msra.mxu0 0
    %1588 = vmatprep.subr.bf16.mxu0 0
    %1589 = vmatpush2.bf16.msra.mxu0 0
    %1590 = vmatprep.subr.bf16.mxu0 0
    %1591 = vmatpush2.bf16.msra.mxu0 0
    %1592 = vmatprep.subr.bf16.mxu0 0
    %1593 = vmatpush2.bf16.msra.mxu0 0
    %1594 = vmatprep.subr.bf16.mxu0 0
    %1595 = vmatpush2.bf16.msra.mxu0 0
    %1596 = vmatprep.mubr.bf16.mxu0 0
    %1597 = vmatmul.mubr.bf16.gmra.mxu0 %v1562
    %v1598 = vpop.f32.mrf.mxu0
    %v1599 = vadd.f32 %v1549, %v1598
    %v1600 = vpop.f32.mrf.mxu0
    %v1601 = vpop.f32.mrf.mxu0
    %v1602 = vadd.f32 %v1552, %v1601
    %v1603 = vpop.f32.mrf.mxu0
    %1604 = vdwg.mxu0
    %v1605 = vlaneseq
    %v1606 = vshrl.u32 %v1605, 7
    %v1607 = vsub.s32 1, %v1606
    %v1608 = vrot.slane %v991, %v1607
    %v1609 = vadd.f32 %v1599, %v1608
    %v1610 = vadd.f32 %v1602, %v1608
    %v1611 = vadd.f32 %v1609, %v988
    %v1612 = vadd.f32 %v1610, %v989
    %v1613 = vsel %vm34, %v1611, 0.0
    %1614 = vadd.xlane.f32.xlu0 %v1613
    %v1615 = vpop.xlane.xlu0 %1614
    %v1616 = vsel %vm34, %v1612, 0.0
    %1617 = vadd.xlane.f32.xlu0 %v1616
    %v1618 = vpop.xlane.xlu0 %1617
    %v1619 = vmul.f32 %v1615, %v41
    %v1620 = vmul.f32 %v1618, %v41
    %v1621 = vsub.f32 %v1611, %v1619
    %v1622 = vsub.f32 %v1612, %v1620
    %v1623 = vmul.f32 %v1621, %v1621
    %v1624 = vmul.f32 %v1622, %v1622
    %v1625 = vsel %vm34, %v1623, 0.0
    %1626 = vadd.xlane.f32.xlu0 %v1625
    %v1627 = vpop.xlane.xlu0 %1626
    %v1628 = vsel %vm34, %v1624, 0.0
    %1629 = vadd.xlane.f32.xlu0 %v1628
    %v1630 = vpop.xlane.xlu0 %1629
    %v1631 = vmul.f32 %v1627, %v41
    %v1632 = vmul.f32 %v1630, %v41
    %v1633 = vadd.f32 %v1631, 1e-12
    %v1634 = vadd.f32 %v1632, 1e-12
    %v1635 = vrsqrt.pop %v1633
    %v1636 = vrsqrt.pop %v1634
    %v1637 = vmul.f32 %v1621, %v1635
    %v1638 = vmul.f32 %v1622, %v1636
    %v1639 = vlaneseq
    %v1640 = vshrl.u32 %v1639, 7
    %v1641 = vsub.s32 2, %v1640
    %v1642 = vrot.slane %v991, %v1641
    %v1643 = vmul.f32 %v1637, %v1642
    %v1644 = vmul.f32 %v1638, %v1642
    %v1645 = vlaneseq
    %v1646 = vshrl.u32 %v1645, 7
    %v1647 = vsub.s32 3, %v1646
    %v1648 = vrot.slane %v991, %v1647
    %v1649 = vadd.f32 %v1643, %v1648
    %v1650 = vadd.f32 %v1644, %v1648
    %s1651 = scalar_lea.vmem %s5, 16
    %v1652 = vld [vmem:[%s1651] sm:$0xf]
    %v1653 = vld [vmem:[%s1651 + $0x4] sm:$0xf]
    %v1654 = vld [vmem:[%s1651 + $0x8] sm:$0xf]
    %v1655 = vld [vmem:[%s1651 + $0xc] sm:$0xf]
    %v1656 = vpack.c.bf16 %v1650, %v1649
    %v1657 = vlaneseq
    %v1658 = vshrl.u32 %v1657, 7
    %v1659 = vsub.s32 4, %v1658
    %v1660 = vrot.slane %v991, %v1659
    %v1665 = vunpack.c.l.b16 %v1652
    %v1666 = vunpack.c.l.b16 %v1653
    %v1667 = vunpack.c.l.b16 %v1654
    %v1668 = vunpack.c.l.b16 %v1655
    %v1669 = vpack.c.b16 %v1666, %v1665
    %v1670 = vpack.c.b16 %v1668, %v1667
    %v1674 = vsel %vm34, %v1656, 0
    %1676 = vmatprep.subr.bf16.mxu0 0
    %1677 = vmatpush1.bf16.msra.mxu0 0
    %1678 = vmatprep.subr.bf16.mxu0 0
    %1679 = vmatpush1.bf16.msra.mxu0 0
    %1680 = vmatprep.subr.bf16.mxu0 0
    %1681 = vmatpush1.bf16.msra.mxu0 0
    %1682 = vmatprep.subr.bf16.mxu0 0
    %1683 = vmatpush1.bf16.msra.mxu0 0
    %1684 = vmatprep.subr.bf16.mxu0 0
    %1685 = vmatpush1.bf16.msra.mxu0 0
    %1686 = vmatprep.subr.bf16.mxu0 0
    %1687 = vmatpush1.bf16.msra.mxu0 0
    %1688 = vmatprep.subr.bf16.mxu0 0
    %1689 = vmatpush1.bf16.msra.mxu0 %v1670
    %1690 = vmatprep.subr.bf16.mxu0 0
    %1691 = vmatpush1.bf16.msra.mxu0 %v1669
    %1692 = vmatprep.subr.bf16.mxu0 0
    %1693 = vmatpush2.bf16.msra.mxu0 0
    %1694 = vmatprep.subr.bf16.mxu0 0
    %1695 = vmatpush2.bf16.msra.mxu0 0
    %1696 = vmatprep.subr.bf16.mxu0 0
    %1697 = vmatpush2.bf16.msra.mxu0 0
    %1698 = vmatprep.subr.bf16.mxu0 0
    %1699 = vmatpush2.bf16.msra.mxu0 0
    %1700 = vmatprep.subr.bf16.mxu0 0
    %1701 = vmatpush2.bf16.msra.mxu0 0
    %1702 = vmatprep.subr.bf16.mxu0 0
    %1703 = vmatpush2.bf16.msra.mxu0 0
    %1704 = vmatprep.subr.bf16.mxu0 0
    %1705 = vmatpush2.bf16.msra.mxu0 0
    %1706 = vmatprep.subr.bf16.mxu0 0
    %1707 = vmatpush2.bf16.msra.mxu0 0
    %1708 = vmatprep.mubr.bf16.mxu0 0
    %1709 = vmatmul.mubr.bf16.gmra.mxu0 %v1674
    %v1710 = vpop.f32.mrf.mxu0
    %v1711 = vadd.f32 %v1660, %v1710
    %v1712 = vpop.f32.mrf.mxu0
    %v1713 = vpop.f32.mrf.mxu0
    %v1714 = vadd.f32 %v1660, %v1713
    %v1715 = vpop.f32.mrf.mxu0
    %1716 = vdwg.mxu0
    %v1717 = vmul.f32 %v1711, 0.70710677
    %v1718 = vmul.f32 %v1714, 0.70710677
    %v1719 = vand.u32 2147483647, %v1717
    %v1720 = vand.u32 2147483647, %v1718
    %v1721 = vmul.f32 %v1719, 0.3275911
    %v1722 = vmul.f32 %v1720, 0.3275911
    %v1723 = vadd.f32 %v1721, 1.0
    %v1724 = vadd.f32 %v1722, 1.0
    %v1725 = vrcp.pop %v1723
    %v1726 = vmul.f32 1.0, %v1725
    %v1727 = vrcp.pop %v1724
    %v1728 = vmul.f32 1.0, %v1727
    %v1729 = vmul.f32 %v1726, 1.0614054
    %v1730 = vmul.f32 %v1728, 1.0614054
    %v1731 = vadd.f32 %v1729, -1.4531521
    %v1732 = vadd.f32 %v1730, -1.4531521
    %v1733 = vmul.f32 %v1731, %v1726
    %v1734 = vmul.f32 %v1732, %v1728
    %v1735 = vadd.f32 %v1733, 1.4214138
    %v1736 = vadd.f32 %v1734, 1.4214138
    %v1737 = vmul.f32 %v1735, %v1726
    %v1738 = vmul.f32 %v1736, %v1728
    %v1739 = vadd.f32 %v1737, -0.28449672
    %v1740 = vadd.f32 %v1738, -0.28449672
    %v1741 = vmul.f32 %v1739, %v1726
    %v1742 = vmul.f32 %v1740, %v1728
    %v1743 = vadd.f32 %v1741, 0.2548296
    %v1744 = vadd.f32 %v1742, 0.2548296
    %v1745 = vmul.f32 %v1743, %v1726
    %v1746 = vmul.f32 %v1744, %v1728
    %v1747 = vsub.f32 0.0, %v1719
    %v1748 = vsub.f32 0.0, %v1720
    %v1749 = vmul.f32 %v1747, %v1719
    %v1750 = vmul.f32 %v1748, %v1720
    %v1751 = vmul.f32 %v1749, 1.442695
    %v1752 = vpow.pop %v1751
    %v1753 = vmul.f32 %v1750, 1.442695
    %v1754 = vpow.pop %v1753
    %v1755 = vmul.f32 %v1745, %v1752
    %v1756 = vmul.f32 %v1746, %v1754
    %v1757 = vsub.f32 1.0, %v1755
    %v1758 = vsub.f32 1.0, %v1756
    %vm1759 = vcmp.ge.f32.partialorder %v1717, 0.0
    %vm1760 = vcmp.ge.f32.partialorder %v1718, 0.0
    %v1761 = vsub.f32 0.0, %v1757
    %v1762 = vsub.f32 0.0, %v1758
    %v1763 = vsel %vm1759, %v1757, %v1761
    %v1764 = vsel %vm1760, %v1758, %v1762
    %v1765 = vmul.f32 %v1711, 0.5
    %v1766 = vmul.f32 %v1714, 0.5
    %v1767 = vadd.f32 %v1763, 1.0
    %v1768 = vadd.f32 %v1764, 1.0
    %v1769 = vmul.f32 %v1765, %v1767
    %v1770 = vmul.f32 %v1766, %v1768
    %s1771 = scalar_lea.vmem %s6, 32
    %v1772 = vld [vmem:[%s1771] sm:$0xf]
    %v1773 = vld [vmem:[%s1771 + $0x4] sm:$0xf]
    %v1774 = vld [vmem:[%s1771 + $0x8] sm:$0xf]
    %v1775 = vld [vmem:[%s1771 + $0xc] sm:$0xf]
    %v1776 = vld [vmem:[%s1771 + $0x10] sm:$0xf]
    %v1777 = vld [vmem:[%s1771 + $0x14] sm:$0xf]
    %v1778 = vld [vmem:[%s1771 + $0x18] sm:$0xf]
    %v1779 = vld [vmem:[%s1771 + $0x1c] sm:$0xf]
    %v1780 = vpack.c.bf16 %v1770, %v1769
    %v1781 = vlaneseq
    %v1782 = vshrl.u32 %v1781, 7
    %v1783 = vsub.s32 5, %v1782
    %v1784 = vrot.slane %v991, %v1783
    %v1793 = vunpack.c.l.b16 %v1772
    %v1794 = vunpack.c.l.b16 %v1773
    %v1795 = vunpack.c.l.b16 %v1774
    %v1796 = vunpack.c.l.b16 %v1775
    %v1797 = vunpack.c.l.b16 %v1776
    %v1798 = vunpack.c.l.b16 %v1777
    %v1799 = vunpack.c.l.b16 %v1778
    %v1800 = vunpack.c.l.b16 %v1779
    %v1801 = vpack.c.b16 %v1794, %v1793
    %v1802 = vpack.c.b16 %v1796, %v1795
    %v1803 = vpack.c.b16 %v1798, %v1797
    %v1804 = vpack.c.b16 %v1800, %v1799
    %v1810 = vsel %vm905, %v1780, 0
    %1812 = vmatprep.subr.bf16.mxu0 0
    %1813 = vmatpush1.bf16.msra.mxu0 0
    %1814 = vmatprep.subr.bf16.mxu0 0
    %1815 = vmatpush1.bf16.msra.mxu0 0
    %1816 = vmatprep.subr.bf16.mxu0 0
    %1817 = vmatpush1.bf16.msra.mxu0 0
    %1818 = vmatprep.subr.bf16.mxu0 0
    %1819 = vmatpush1.bf16.msra.mxu0 0
    %1820 = vmatprep.subr.bf16.mxu0 0
    %1821 = vmatpush1.bf16.msra.mxu0 %v1804
    %1822 = vmatprep.subr.bf16.mxu0 0
    %1823 = vmatpush1.bf16.msra.mxu0 %v1803
    %1824 = vmatprep.subr.bf16.mxu0 0
    %1825 = vmatpush1.bf16.msra.mxu0 %v1802
    %1826 = vmatprep.subr.bf16.mxu0 0
    %1827 = vmatpush1.bf16.msra.mxu0 %v1801
    %1828 = vmatprep.subr.bf16.mxu0 0
    %1829 = vmatpush2.bf16.msra.mxu0 0
    %1830 = vmatprep.subr.bf16.mxu0 0
    %1831 = vmatpush2.bf16.msra.mxu0 0
    %1832 = vmatprep.subr.bf16.mxu0 0
    %1833 = vmatpush2.bf16.msra.mxu0 0
    %1834 = vmatprep.subr.bf16.mxu0 0
    %1835 = vmatpush2.bf16.msra.mxu0 0
    %1836 = vmatprep.subr.bf16.mxu0 0
    %1837 = vmatpush2.bf16.msra.mxu0 0
    %1838 = vmatprep.subr.bf16.mxu0 0
    %1839 = vmatpush2.bf16.msra.mxu0 0
    %1840 = vmatprep.subr.bf16.mxu0 0
    %1841 = vmatpush2.bf16.msra.mxu0 0
    %1842 = vmatprep.subr.bf16.mxu0 0
    %1843 = vmatpush2.bf16.msra.mxu0 0
    %1844 = vmatprep.mubr.bf16.mxu0 0
    %1845 = vmatmul.mubr.bf16.gmra.mxu0 %v1810
    %v1846 = vpop.f32.mrf.mxu0
    %v1847 = vadd.f32 %v1784, %v1846
    %v1848 = vpop.f32.mrf.mxu0
    %v1849 = vpop.f32.mrf.mxu0
    %v1850 = vadd.f32 %v1784, %v1849
    %v1851 = vpop.f32.mrf.mxu0
    %1852 = vdwg.mxu0
    %v1853 = vadd.f32 %v1847, %v1649
    %v1854 = vadd.f32 %v1850, %v1650
    %v1855 = vsel %vm34, %v1853, 0.0
    %1856 = vadd.xlane.f32.xlu0 %v1855
    %v1857 = vpop.xlane.xlu0 %1856
    %v1858 = vsel %vm34, %v1854, 0.0
    %1859 = vadd.xlane.f32.xlu0 %v1858
    %v1860 = vpop.xlane.xlu0 %1859
    %v1861 = vmul.f32 %v1857, %v41
    %v1862 = vmul.f32 %v1860, %v41
    %v1863 = vsub.f32 %v1853, %v1861
    %v1864 = vsub.f32 %v1854, %v1862
    %v1865 = vmul.f32 %v1863, %v1863
    %v1866 = vmul.f32 %v1864, %v1864
    %v1867 = vsel %vm34, %v1865, 0.0
    %1868 = vadd.xlane.f32.xlu0 %v1867
    %v1869 = vpop.xlane.xlu0 %1868
    %v1870 = vsel %vm34, %v1866, 0.0
    %1871 = vadd.xlane.f32.xlu0 %v1870
    %v1872 = vpop.xlane.xlu0 %1871
    %v1873 = vmul.f32 %v1869, %v41
    %v1874 = vmul.f32 %v1872, %v41
    %v1875 = vadd.f32 %v1873, 1e-12
    %v1876 = vadd.f32 %v1874, 1e-12
    %v1877 = vrsqrt.pop %v1875
    %v1878 = vrsqrt.pop %v1876
    %v1879 = vmul.f32 %v1863, %v1877
    %v1880 = vmul.f32 %v1864, %v1878
    %v1881 = vlaneseq
    %v1882 = vshrl.u32 %v1881, 7
    %v1883 = vsub.s32 6, %v1882
    %v1884 = vrot.slane %v991, %v1883
    %v1885 = vmul.f32 %v1879, %v1884
    %v1886 = vmul.f32 %v1880, %v1884
    %v1887 = vlaneseq
    %v1888 = vshrl.u32 %v1887, 7
    %v1889 = vsub.s32 7, %v1888
    %v1890 = vrot.slane %v991, %v1889
    %v1891 = vadd.f32 %v1885, %v1890
    %v1892 = vadd.f32 %v1886, %v1890
    %1893 = vst.msk [vmem:[#allocation2] sm:$0xff] %vm34, %v1891
    %1894 = vst.msk [vmem:[#allocation2 + $0x8] sm:$0xff] %vm34, %v1892
    // Predicated region
    $region34: #{textnet_forward.1} parent=1 // pred_check
      _
    $region35: #{textnet_forward.1} parent=1 // pred_check_branch
      %1896 = sbr.rel (0) target = $region37
    $region36: #{textnet_forward.1} parent=1 // pred_region
      %s1898 = ssub.s32 256, 256
      %1899 = vsyncadd [#allocation3], %s1898
      %s1900 = sshll.u32 [#allocation2], 4
      %s1901 = int_to_ptr.vmem [resolvable:$true] %s1900
      %1906 = dma.vmem_to_hbm [thread:$0]  %s1901, 256, %s8, [#allocation3], 128, 128, 8
    $region37: #{textnet_forward.1} parent=1 // pred_fallthru
      _
    // Predicated region
    $region38: #{textnet_forward.1} parent=1 // pred_check
      _
    $region39: #{textnet_forward.1} parent=1 // pred_check_branch
      %1908 = sbr.rel (0) target = $region41
    $region40: #{textnet_forward.1} parent=1 // pred_region
      %1909 = dma.done [#allocation3], 256
    $region41: #{textnet_forward.1} parent=1 // pred_fallthru
      _
    %1910 = vsyncpa [#allocation3], 1

</llo_original>
